<compile_context>
chip_gen: v6e
topology: v6e:2x2x1
jax: 0.10.0
libtpu: 0.0.40
codegen_flags: <defaults>
</compile_context>

<pallas_src>
import functools
import numpy as np
import jax
import jax.numpy as jnp
from jax import lax
from jax.experimental import pallas as pl
from jax.experimental.pallas import tpu as pltpu  # noqa: F401  (kept for TPU-specific tuning hooks)


# ----------------------------- in-kernel helpers ---------------------------- #

def _row_select(rows_out, rows_in, h_out, h_in, stride, ky, transposed):
    """One-hot (rows_out, rows_in) row-selection / row-placement matrix built from 2-D iota.

    Rows are (image, image-row) pairs: r = n*h_out + oy, q = n*h_in + iy.
      conv  (transposed=False): S[r, q] = 1  iff same image and iy == stride*oy + ky
      tconv (transposed=True):  S[r, q] = 1  iff same image and oy == stride*iy + ky
    Float iota arithmetic only (exact for these tiny extents) — no integer div/mod, no
    host-side selection operands.
    """
    r = lax.broadcasted_iota(jnp.int32, (rows_out, rows_in), 0).astype(jnp.float32)
    q = lax.broadcasted_iota(jnp.int32, (rows_out, rows_in), 1).astype(jnp.float32)
    n_r = jnp.floor(r * (1.0 / h_out))
    n_q = jnp.floor(q * (1.0 / h_in))
    oy = r - n_r * h_out
    iy = q - n_q * h_in
    if transposed:
        hit = oy == stride * iy + float(ky)
    else:
        hit = iy == stride * oy + float(ky)
    return jnp.where((n_r == n_q) & hit, 1.0, 0.0).astype(jnp.float32)


def _layer(x, w_ref, b_ref, n_img, stride, transposed):
    """One conv / conv-transpose layer on flattened-row activations.

    x:     (n_img*H_in, W_in*Cin)       image rows, channel-minor.
    w_ref: (kh, W_in*Cin, W_out*Cout)   per-kernel-row Toeplitz weight (host-built): folds the
                                        W-axis taps, the W stride/dilation and the channel mixing
                                        into ONE well-shaped 2-D dot per kernel row.
    b_ref: (1, W_out*Cout)              bias, pre-tiled along W_out.
    """
    kh = w_ref.shape[0]
    h_in = x.shape[0] // n_img
    h_out = (h_in - 1) * stride + kh if transposed else (h_in - kh) // stride + 1
    rows_in, rows_out = n_img * h_in, n_img * h_out
    acc = jnp.zeros((rows_out, w_ref.shape[-1]), jnp.float32)
    for ky in range(kh):
        sel = _row_select(rows_out, rows_in, h_out, h_in, stride, ky, transposed)
        if transposed:
            # expand: compute contributions of every input row, then place rows on the
            # stride-dilated output lattice (no zero-dilated input is ever materialized).
            y = jnp.dot(x, w_ref[ky], preferred_element_type=jnp.float32)
            acc = acc + jnp.dot(sel, y, preferred_element_type=jnp.float32)
        else:
            # reduce: gather only the stride-selected rows first (stride at source — no
            # redundant stride-1 work), then one dot against the Toeplitz weight.
            xs = jnp.dot(sel, x, preferred_element_type=jnp.float32)
            acc = acc + jnp.dot(xs, w_ref[ky], preferred_element_type=jnp.float32)
    return acc + b_ref[...]


def _quantize(x):
    """out_max = max(x); trunc(x / out_max * 256) / 256 * out_max   (matches torch enc()/dec())."""
    m = jnp.max(x)
    m = jnp.where(m == 0.0, 1.0, m)     # guard: the torch reference would emit NaN for all-zeros
    t = x * (256.0 / m)                 # single scalar divide total, hoisted off the element path
    t = jnp.where(t >= 0.0, jnp.floor(t), jnp.ceil(t))   # trunc toward zero (.type(torch.int))
    return t * (m * (1.0 / 256.0))


# ------------------------------- fused kernels ------------------------------ #

def _encoder_kernel(x_ref, w1_ref, b1_ref, w2_ref, b2_ref, w3_ref, b3_ref, o_ref, *, n_img):
    a = _layer(x_ref[...], w1_ref, b1_ref, n_img, 1, False)    # conv1: k=2, s=1
    a = _layer(a, w2_ref, b2_ref, n_img, 2, False)             # conv2: k=3, s=2
    a = _layer(a, w3_ref, b3_ref, n_img, 2, False)             # conv3: k=3, s=2
    o_ref[...] = _quantize(a)


def _decoder_kernel(z_ref, w3_ref, b3_ref, w4_ref, b4_ref, w5_ref, b5_ref, o_ref, *, n_img):
    a = _layer(z_ref[...], w3_ref, b3_ref, n_img, 2, True)     # tconv3: k=3, s=2
    a = _layer(a, w4_ref, b4_ref, n_img, 2, True)              # tconv4: k=3, s=2
    a = _layer(a, w5_ref, b5_ref, n_img, 1, True)              # tconv5: k=2, s=1
    o_ref[...] = _quantize(a)


# ------------------------- host-side parameter prep ------------------------- #

def _conv_big(w, b, w_in, stride):
    """torch Conv2d weight (Cout,Cin,kh,kw) -> per-kernel-row Toeplitz (kh, W_in*Cin, OW*Cout).

    big[ky][ix*Cin+ci, ox*Cout+co] = w[co, ci, ky, ix - stride*ox] (0 when the tap is out of
    range), so one dot against a flattened image row performs the whole strided W-axis conv.
    """
    w = np.asarray(w); b = np.asarray(b)
    cout, cin, kh, kw = w.shape
    ow = (w_in - kw) // stride + 1
    big = np.zeros((kh, w_in * cin, ow * cout), np.float32)
    for ky in range(kh):
        for ox in range(ow):
            for kx in range(kw):
                ix = stride * ox + kx
                big[ky, ix * cin:(ix + 1) * cin, ox * cout:(ox + 1) * cout] = w[:, :, ky, kx].T
    bias = np.tile(b.astype(np.float32), ow).reshape(1, ow * cout)
    return jnp.asarray(big), jnp.asarray(bias)


def _tconv_big(w, b, w_in, stride):
    """torch ConvTranspose2d weight (Cin,Cout,kh,kw) -> (kh, W_in*Cin, W_out*Cout) Toeplitz.

    big[ky][ix*Cin+ci, ox*Cout+co] = w[ci, co, ky, ox - stride*ix]; the W zero-insertion /
    dilation is folded into the matrix, so no dilated input is ever materialized.
    """
    w = np.asarray(w); b = np.asarray(b)
    cin, cout, kh, kw = w.shape
    w_out = (w_in - 1) * stride + kw
    big = np.zeros((kh, w_in * cin, w_out * cout), np.float32)
    for ky in range(kh):
        for ix in range(w_in):
            for kx in range(kw):
                ox = stride * ix + kx
                big[ky, ix * cin:(ix + 1) * cin, ox * cout:(ox + 1) * cout] = w[:, :, ky, kx]
    bias = np.tile(b.astype(np.float32), w_out).reshape(1, w_out * cout)
    return jnp.asarray(big), jnp.asarray(bias)


# ------------------------------ jitted wrappers ------------------------------ #

@functools.partial(jax.jit, static_argnames=("out_ch",))
def _encode_nchw(x_nchw, w1, b1, w2, b2, w3, b3, *, out_ch):
    n, c, h, w = x_nchw.shape
    x = jnp.transpose(x_nchw, (0, 2, 3, 1)).reshape(n * h, w * c)   # flattened rows, channel-minor
    h1 = h - w1.shape[0] + 1                        # conv1: k=2, s=1
    h2 = (h1 - w2.shape[0]) // 2 + 1                # conv2: k=3, s=2
    h3 = (h2 - w3.shape[0]) // 2 + 1                # conv3: k=3, s=2
    out = pl.pallas_call(
        functools.partial(_encoder_kernel, n_img=n),
        out_shape=jax.ShapeDtypeStruct((n * h3, w3.shape[-1]), jnp.float32),
    )(x, w1, b1, w2, b2, w3, b3)
    ow3 = w3.shape[-1] // out_ch
    return jnp.transpose(out.reshape(n, h3, ow3, out_ch), (0, 3, 1, 2))   # NHWC -> NCHW boundary


@functools.partial(jax.jit, static_argnames=("out_c",))
def _decode_nchw(z_nchw, w3, b3, w4, b4, w5, b5, *, out_c):
    n, c, h, w = z_nchw.shape
    z = jnp.transpose(z_nchw, (0, 2, 3, 1)).reshape(n * h, w * c)
    h3 = (h - 1) * 2 + w3.shape[0]                  # tconv3: k=3, s=2
    h4 = (h3 - 1) * 2 + w4.shape[0]                 # tconv4: k=3, s=2
    h5 = (h4 - 1) * 1 + w5.shape[0]                 # tconv5: k=2, s=1
    out = pl.pallas_call(
        functools.partial(_decoder_kernel, n_img=n),
        out_shape=jax.ShapeDtypeStruct((n * h5, w5.shape[-1]), jnp.float32),
    )(z, w3, b3, w4, b4, w5, b5)
    ow5 = w5.shape[-1] // out_c
    return jnp.transpose(out.reshape(n, h5, ow5, out_c), (0, 3, 1, 2))


# ----------------------------------- module ---------------------------------- #

class SemanticNNPallas:
    def __init__(self, out_ch=16, key=jax.random.PRNGKey(1)):
        def conv_init(k, cout, cin, ks):
            k1, k2 = jax.random.split(k)
            bound = 1.0 / np.sqrt(cin * ks * ks)
            w = jax.random.uniform(k1, (cout, cin, ks, ks), jnp.float32, -bound, bound)
            b = jax.random.uniform(k2, (cout,), jnp.float32, -bound, bound)
            return w, b

        def tconv_init(k, cin, cout, ks):
            k1, k2 = jax.random.split(k)
            bound = 1.0 / np.sqrt(cout * ks * ks)
            w = jax.random.uniform(k1, (cin, cout, ks, ks), jnp.float32, -bound, bound)
            b = jax.random.uniform(k2, (cout,), jnp.float32, -bound, bound)
            return w, b

        keys = jax.random.split(key, 6)
        self.out_ch = out_ch
        self.conv1 = conv_init(keys[0], out_ch, 3, 2)
        self.conv2 = conv_init(keys[1], out_ch, out_ch, 3)
        self.conv3 = conv_init(keys[2], out_ch, out_ch, 3)
        self.tconv3 = tconv_init(keys[3], out_ch, out_ch, 3)
        self.tconv4 = tconv_init(keys[4], out_ch, out_ch, 3)
        self.tconv5 = tconv_init(keys[5], out_ch, 3, 2)
        self._enc_cache = {}   # keyed by input image width
        self._dec_cache = {}   # keyed by latent width

    def _enc_big(self, w_img):
        if w_img not in self._enc_cache:
            w1, b1 = _conv_big(*self.conv1, w_img, 1)
            w1w = w_img - 2 + 1
            w2, b2 = _conv_big(*self.conv2, w1w, 2)
            w2w = (w1w - 3) // 2 + 1
            w3, b3 = _conv_big(*self.conv3, w2w, 2)
            self._enc_cache[w_img] = (w1, b1, w2, b2, w3, b3)
        return self._enc_cache[w_img]

    def _dec_big(self, w_lat):
        if w_lat not in self._dec_cache:
            w3, b3 = _tconv_big(*self.tconv3, w_lat, 2)
            w3w = (w_lat - 1) * 2 + 3
            w4, b4 = _tconv_big(*self.tconv4, w3w, 2)
            w4w = (w3w - 1) * 2 + 3
            w5, b5 = _tconv_big(*self.tconv5, w4w, 1)
            self._dec_cache[w_lat] = (w3, b3, w4, b4, w5, b5)
        return self._dec_cache[w_lat]

    def forward(self, x):
        # SemanticNN.forward is exactly `return x`; no kernel/copy is needed.
        return x

    def enc_features(self, x):
        # TODO(synk): img2bin (host-side python bit-string loops) has no Pallas equivalent;
        # the quantized feature map is returned directly instead.
        return _encode_nchw(x, *self._enc_big(x.shape[-1]), out_ch=self.out_ch)

    def dec_features(self, z):
        # TODO(synk): bin2img bit-deserialization omitted; quantized features fed directly.
        return _decode_nchw(z, *self._dec_big(z.shape[-1]), out_c=3)


# ------------------------------ pure-XLA reference ---------------------------- #

def _ref_conv(x, w, b, stride):
    out = jax.lax.conv_general_dilated(
        x, w, (stride, stride), "VALID",
        dimension_numbers=("NCHW", "OIHW", "NCHW"))
    return out + b.reshape(1, -1, 1, 1)


def _ref_tconv(x, w, b, stride):
    kh, kw = w.shape[2], w.shape[3]
    w_conv = jnp.transpose(w[:, :, ::-1, ::-1], (1, 0, 2, 3))
    out = jax.lax.conv_general_dilated(
        x, w_conv, (1, 1), ((kh - 1, kh - 1), (kw - 1, kw - 1)),
        lhs_dilation=(stride, stride),
        dimension_numbers=("NCHW", "OIHW", "NCHW"))
    return out + b.reshape(1, -1, 1, 1)


def _ref_quant(x):
    m = jnp.max(x)
    t = x / m * 256.0
    t = jnp.where(t >= 0.0, jnp.floor(t), jnp.ceil(t))
    return t / 256.0 * m


def _ref_encode(model, x):
    out = _ref_conv(x, *model.conv1, stride=1)
    out = _ref_conv(out, *model.conv2, stride=2)
    out = _ref_conv(out, *model.conv3, stride=2)
    return _ref_quant(out)


def _ref_decode(model, z):
    out = _ref_tconv(z, *model.tconv3, stride=2)
    out = _ref_tconv(out, *model.tconv4, stride=2)
    out = _ref_tconv(out, *model.tconv5, stride=1)
    return _ref_quant(out)


# ------------------------------------ main ------------------------------------ #

if __name__ == "__main__":
    x = jax.random.normal(jax.random.PRNGKey(0), (2, 3, 16, 16), jnp.float32)  # NCHW like PyTorch
    model = SemanticNNPallas(out_ch=16, key=jax.random.PRNGKey(1))

    # forward(): exact module semantics — identity.
    y = model.forward(x)
    assert y.shape == x.shape and y.dtype == x.dtype
    np.testing.assert_array_equal(np.asarray(y), np.asarray(x))

    # Fused encoder / decoder Pallas kernels (one gridless pallas_call each).
    z = model.enc_features(x)            # (2, 16, 3, 3)
    r = model.dec_features(z)            # (2, 3, 16, 16)
    jax.block_until_ready((z, r))
    assert z.shape == (2, 16, 3, 3), z.shape
    assert r.shape == (2, 3, 16, 16), r.shape

    # Check against a pure-XLA reference (conv_general_dilated + identical quantization).
    z_ref = _ref_encode(model, x)
    r_ref = _ref_decode(model, z)        # feed the Pallas z so the decoder check is independent
    np.testing.assert_allclose(np.asarray(z), np.asarray(z_ref), rtol=2e-2, atol=2e-2)
    np.testing.assert_allclose(np.asarray(r), np.asarray(r_ref), rtol=2e-2, atol=2e-2)

    print("KERNEL_OK")
</pallas_src>

<mosaic_0001>
module attributes {stable_mosaic.version = 11 : i64} {
  func.func @_encoder_kernel(%arg0: memref<32x48xf32, #tpu.memory_space<vmem>>, %arg1: memref<2x48x240xf32, #tpu.memory_space<vmem>>, %arg2: memref<1x240xf32, #tpu.memory_space<vmem>>, %arg3: memref<3x240x112xf32, #tpu.memory_space<vmem>>, %arg4: memref<1x112xf32, #tpu.memory_space<vmem>>, %arg5: memref<3x112x48xf32, #tpu.memory_space<vmem>>, %arg6: memref<1x48xf32, #tpu.memory_space<vmem>>, %arg7: memref<6x48xf32, #tpu.memory_space<vmem>>) attributes {dimension_semantics = [], scalar_prefetch = 0 : i64, scratch_operands = 0 : i64, tpu.core_type = #tpu.core_type<tc>} {
    %c0 = arith.constant 0 : index
    %c0_0 = arith.constant 0 : index
    %0 = vector.load %arg0[%c0, %c0_0] : memref<32x48xf32, #tpu.memory_space<vmem>>, vector<32x48xf32>
    %cst = arith.constant 0.000000e+00 : f32
    %1 = vector.broadcast %cst : f32 to vector<30x240xf32>
    %2 = tpu.iota {dimensions = array<i32: 0>} : vector<30x32xi32>
    %3 = arith.sitofp %2 : vector<30x32xi32> to vector<30x32xf32>
    %4 = tpu.iota {dimensions = array<i32: 1>} : vector<30x32xi32>
    %5 = arith.sitofp %4 : vector<30x32xi32> to vector<30x32xf32>
    %cst_1 = arith.constant 0.0666666701 : f32
    %6 = vector.broadcast %cst_1 : f32 to vector<30x32xf32>
    %7 = arith.mulf %3, %6 : vector<30x32xf32>
    %8 = math.floor %7 : vector<30x32xf32>
    %cst_2 = arith.constant 6.250000e-02 : f32
    %9 = vector.broadcast %cst_2 : f32 to vector<30x32xf32>
    %10 = arith.mulf %5, %9 : vector<30x32xf32>
    %11 = math.floor %10 : vector<30x32xf32>
    %cst_3 = arith.constant 1.500000e+01 : f32
    %12 = vector.broadcast %cst_3 : f32 to vector<30x32xf32>
    %13 = arith.mulf %8, %12 : vector<30x32xf32>
    %14 = arith.subf %3, %13 : vector<30x32xf32>
    %cst_4 = arith.constant 1.600000e+01 : f32
    %15 = vector.broadcast %cst_4 : f32 to vector<30x32xf32>
    %16 = arith.mulf %11, %15 : vector<30x32xf32>
    %17 = arith.subf %5, %16 : vector<30x32xf32>
    %cst_5 = arith.constant 1.000000e+00 : f32
    %18 = vector.broadcast %cst_5 : f32 to vector<30x32xf32>
    %19 = arith.mulf %18, %14 : vector<30x32xf32>
    %cst_6 = arith.constant 0.000000e+00 : f32
    %20 = vector.broadcast %cst_6 : f32 to vector<30x32xf32>
    %21 = arith.addf %19, %20 : vector<30x32xf32>
    %22 = arith.cmpf oeq, %17, %21 : vector<30x32xf32>
    %23 = arith.cmpf oeq, %8, %11 : vector<30x32xf32>
    %24 = arith.andi %23, %22 : vector<30x32xi1>
    %cst_7 = arith.constant 1.000000e+00 : f32
    %cst_8 = arith.constant 0.000000e+00 : f32
    %25 = vector.broadcast %cst_7 : f32 to vector<30x32xf32>
    %26 = vector.broadcast %cst_8 : f32 to vector<30x32xf32>
    %27 = arith.select %24, %25, %26 : vector<30x32xi1>, vector<30x32xf32>
    %cst_9 = arith.constant dense<0.000000e+00> : vector<30x48xf32>
    %28 = tpu.matmul %27, %0, %cst_9 {dimension_numbers = #tpu.dot_dimension_numbers<[1], [0], [0], [1], [0, 0, 1, 1], [], []>} : vector<30x32xf32>, vector<32x48xf32>, vector<30x48xf32> -> vector<30x48xf32>
    %c0_10 = arith.constant 0 : index
    %c0_11 = arith.constant 0 : index
    %c0_12 = arith.constant 0 : index
    %29 = vector.load %arg1[%c0_10, %c0_11, %c0_12] : memref<2x48x240xf32, #tpu.memory_space<vmem>>, vector<1x48x240xf32>
    %30 = vector.shape_cast %29 : vector<1x48x240xf32> to vector<48x240xf32>
    %cst_13 = arith.constant dense<0.000000e+00> : vector<30x240xf32>
    %31 = tpu.matmul %28, %30, %cst_13 {dimension_numbers = #tpu.dot_dimension_numbers<[1], [0], [0], [1], [0, 0, 1, 1], [], []>} : vector<30x48xf32>, vector<48x240xf32>, vector<30x240xf32> -> vector<30x240xf32>
    %32 = arith.addf %1, %31 : vector<30x240xf32>
    %33 = tpu.iota {dimensions = array<i32: 0>} : vector<30x32xi32>
    %34 = arith.sitofp %33 : vector<30x32xi32> to vector<30x32xf32>
    %35 = tpu.iota {dimensions = array<i32: 1>} : vector<30x32xi32>
    %36 = arith.sitofp %35 : vector<30x32xi32> to vector<30x32xf32>
    %cst_14 = arith.constant 0.0666666701 : f32
    %37 = vector.broadcast %cst_14 : f32 to vector<30x32xf32>
    %38 = arith.mulf %34, %37 : vector<30x32xf32>
    %39 = math.floor %38 : vector<30x32xf32>
    %cst_15 = arith.constant 6.250000e-02 : f32
    %40 = vector.broadcast %cst_15 : f32 to vector<30x32xf32>
    %41 = arith.mulf %36, %40 : vector<30x32xf32>
    %42 = math.floor %41 : vector<30x32xf32>
    %cst_16 = arith.constant 1.500000e+01 : f32
    %43 = vector.broadcast %cst_16 : f32 to vector<30x32xf32>
    %44 = arith.mulf %39, %43 : vector<30x32xf32>
    %45 = arith.subf %34, %44 : vector<30x32xf32>
    %cst_17 = arith.constant 1.600000e+01 : f32
    %46 = vector.broadcast %cst_17 : f32 to vector<30x32xf32>
    %47 = arith.mulf %42, %46 : vector<30x32xf32>
    %48 = arith.subf %36, %47 : vector<30x32xf32>
    %cst_18 = arith.constant 1.000000e+00 : f32
    %49 = vector.broadcast %cst_18 : f32 to vector<30x32xf32>
    %50 = arith.mulf %49, %45 : vector<30x32xf32>
    %cst_19 = arith.constant 1.000000e+00 : f32
    %51 = vector.broadcast %cst_19 : f32 to vector<30x32xf32>
    %52 = arith.addf %50, %51 : vector<30x32xf32>
    %53 = arith.cmpf oeq, %48, %52 : vector<30x32xf32>
    %54 = arith.cmpf oeq, %39, %42 : vector<30x32xf32>
    %55 = arith.andi %54, %53 : vector<30x32xi1>
    %cst_20 = arith.constant 1.000000e+00 : f32
    %cst_21 = arith.constant 0.000000e+00 : f32
    %56 = vector.broadcast %cst_20 : f32 to vector<30x32xf32>
    %57 = vector.broadcast %cst_21 : f32 to vector<30x32xf32>
    %58 = arith.select %55, %56, %57 : vector<30x32xi1>, vector<30x32xf32>
    %cst_22 = arith.constant dense<0.000000e+00> : vector<30x48xf32>
    %59 = tpu.matmul %58, %0, %cst_22 {dimension_numbers = #tpu.dot_dimension_numbers<[1], [0], [0], [1], [0, 0, 1, 1], [], []>} : vector<30x32xf32>, vector<32x48xf32>, vector<30x48xf32> -> vector<30x48xf32>
    %c1 = arith.constant 1 : index
    %c0_23 = arith.constant 0 : index
    %c0_24 = arith.constant 0 : index
    %60 = vector.load %arg1[%c1, %c0_23, %c0_24] : memref<2x48x240xf32, #tpu.memory_space<vmem>>, vector<1x48x240xf32>
    %61 = vector.shape_cast %60 : vector<1x48x240xf32> to vector<48x240xf32>
    %cst_25 = arith.constant dense<0.000000e+00> : vector<30x240xf32>
    %62 = tpu.matmul %59, %61, %cst_25 {dimension_numbers = #tpu.dot_dimension_numbers<[1], [0], [0], [1], [0, 0, 1, 1], [], []>} : vector<30x48xf32>, vector<48x240xf32>, vector<30x240xf32> -> vector<30x240xf32>
    %63 = arith.addf %32, %62 : vector<30x240xf32>
    %c0_26 = arith.constant 0 : index
    %c0_27 = arith.constant 0 : index
    %64 = vector.load %arg2[%c0_26, %c0_27] : memref<1x240xf32, #tpu.memory_space<vmem>>, vector<1x240xf32>
    %65 = vector.broadcast %64 : vector<1x240xf32> to vector<30x240xf32>
    %66 = arith.addf %63, %65 : vector<30x240xf32>
    %cst_28 = arith.constant 0.000000e+00 : f32
    %67 = vector.broadcast %cst_28 : f32 to vector<14x112xf32>
    %68 = tpu.iota {dimensions = array<i32: 0>} : vector<14x30xi32>
    %69 = arith.sitofp %68 : vector<14x30xi32> to vector<14x30xf32>
    %70 = tpu.iota {dimensions = array<i32: 1>} : vector<14x30xi32>
    %71 = arith.sitofp %70 : vector<14x30xi32> to vector<14x30xf32>
    %cst_29 = arith.constant 0.142857149 : f32
    %72 = vector.broadcast %cst_29 : f32 to vector<14x30xf32>
    %73 = arith.mulf %69, %72 : vector<14x30xf32>
    %74 = math.floor %73 : vector<14x30xf32>
    %cst_30 = arith.constant 0.0666666701 : f32
    %75 = vector.broadcast %cst_30 : f32 to vector<14x30xf32>
    %76 = arith.mulf %71, %75 : vector<14x30xf32>
    %77 = math.floor %76 : vector<14x30xf32>
    %cst_31 = arith.constant 7.000000e+00 : f32
    %78 = vector.broadcast %cst_31 : f32 to vector<14x30xf32>
    %79 = arith.mulf %74, %78 : vector<14x30xf32>
    %80 = arith.subf %69, %79 : vector<14x30xf32>
    %cst_32 = arith.constant 1.500000e+01 : f32
    %81 = vector.broadcast %cst_32 : f32 to vector<14x30xf32>
    %82 = arith.mulf %77, %81 : vector<14x30xf32>
    %83 = arith.subf %71, %82 : vector<14x30xf32>
    %cst_33 = arith.constant 2.000000e+00 : f32
    %84 = vector.broadcast %cst_33 : f32 to vector<14x30xf32>
    %85 = arith.mulf %84, %80 : vector<14x30xf32>
    %cst_34 = arith.constant 0.000000e+00 : f32
    %86 = vector.broadcast %cst_34 : f32 to vector<14x30xf32>
    %87 = arith.addf %85, %86 : vector<14x30xf32>
    %88 = arith.cmpf oeq, %83, %87 : vector<14x30xf32>
    %89 = arith.cmpf oeq, %74, %77 : vector<14x30xf32>
    %90 = arith.andi %89, %88 : vector<14x30xi1>
    %cst_35 = arith.constant 1.000000e+00 : f32
    %cst_36 = arith.constant 0.000000e+00 : f32
    %91 = vector.broadcast %cst_35 : f32 to vector<14x30xf32>
    %92 = vector.broadcast %cst_36 : f32 to vector<14x30xf32>
    %93 = arith.select %90, %91, %92 : vector<14x30xi1>, vector<14x30xf32>
    %cst_37 = arith.constant dense<0.000000e+00> : vector<14x240xf32>
    %94 = tpu.matmul %93, %66, %cst_37 {dimension_numbers = #tpu.dot_dimension_numbers<[1], [0], [0], [1], [0, 0, 1, 1], [], []>} : vector<14x30xf32>, vector<30x240xf32>, vector<14x240xf32> -> vector<14x240xf32>
    %c0_38 = arith.constant 0 : index
    %c0_39 = arith.constant 0 : index
    %c0_40 = arith.constant 0 : index
    %95 = vector.load %arg3[%c0_38, %c0_39, %c0_40] : memref<3x240x112xf32, #tpu.memory_space<vmem>>, vector<1x240x112xf32>
    %96 = vector.shape_cast %95 : vector<1x240x112xf32> to vector<240x112xf32>
    %cst_41 = arith.constant dense<0.000000e+00> : vector<14x112xf32>
    %97 = tpu.matmul %94, %96, %cst_41 {dimension_numbers = #tpu.dot_dimension_numbers<[1], [0], [0], [1], [0, 0, 1, 1], [], []>} : vector<14x240xf32>, vector<240x112xf32>, vector<14x112xf32> -> vector<14x112xf32>
    %98 = arith.addf %67, %97 : vector<14x112xf32>
    %99 = tpu.iota {dimensions = array<i32: 0>} : vector<14x30xi32>
    %100 = arith.sitofp %99 : vector<14x30xi32> to vector<14x30xf32>
    %101 = tpu.iota {dimensions = array<i32: 1>} : vector<14x30xi32>
    %102 = arith.sitofp %101 : vector<14x30xi32> to vector<14x30xf32>
    %cst_42 = arith.constant 0.142857149 : f32
    %103 = vector.broadcast %cst_42 : f32 to vector<14x30xf32>
    %104 = arith.mulf %100, %103 : vector<14x30xf32>
    %105 = math.floor %104 : vector<14x30xf32>
    %cst_43 = arith.constant 0.0666666701 : f32
    %106 = vector.broadcast %cst_43 : f32 to vector<14x30xf32>
    %107 = arith.mulf %102, %106 : vector<14x30xf32>
    %108 = math.floor %107 : vector<14x30xf32>
    %cst_44 = arith.constant 7.000000e+00 : f32
    %109 = vector.broadcast %cst_44 : f32 to vector<14x30xf32>
    %110 = arith.mulf %105, %109 : vector<14x30xf32>
    %111 = arith.subf %100, %110 : vector<14x30xf32>
    %cst_45 = arith.constant 1.500000e+01 : f32
    %112 = vector.broadcast %cst_45 : f32 to vector<14x30xf32>
    %113 = arith.mulf %108, %112 : vector<14x30xf32>
    %114 = arith.subf %102, %113 : vector<14x30xf32>
    %cst_46 = arith.constant 2.000000e+00 : f32
    %115 = vector.broadcast %cst_46 : f32 to vector<14x30xf32>
    %116 = arith.mulf %115, %111 : vector<14x30xf32>
    %cst_47 = arith.constant 1.000000e+00 : f32
    %117 = vector.broadcast %cst_47 : f32 to vector<14x30xf32>
    %118 = arith.addf %116, %117 : vector<14x30xf32>
    %119 = arith.cmpf oeq, %114, %118 : vector<14x30xf32>
    %120 = arith.cmpf oeq, %105, %108 : vector<14x30xf32>
    %121 = arith.andi %120, %119 : vector<14x30xi1>
    %cst_48 = arith.constant 1.000000e+00 : f32
    %cst_49 = arith.constant 0.000000e+00 : f32
    %122 = vector.broadcast %cst_48 : f32 to vector<14x30xf32>
    %123 = vector.broadcast %cst_49 : f32 to vector<14x30xf32>
    %124 = arith.select %121, %122, %123 : vector<14x30xi1>, vector<14x30xf32>
    %cst_50 = arith.constant dense<0.000000e+00> : vector<14x240xf32>
    %125 = tpu.matmul %124, %66, %cst_50 {dimension_numbers = #tpu.dot_dimension_numbers<[1], [0], [0], [1], [0, 0, 1, 1], [], []>} : vector<14x30xf32>, vector<30x240xf32>, vector<14x240xf32> -> vector<14x240xf32>
    %c1_51 = arith.constant 1 : index
    %c0_52 = arith.constant 0 : index
    %c0_53 = arith.constant 0 : index
    %126 = vector.load %arg3[%c1_51, %c0_52, %c0_53] : memref<3x240x112xf32, #tpu.memory_space<vmem>>, vector<1x240x112xf32>
    %127 = vector.shape_cast %126 : vector<1x240x112xf32> to vector<240x112xf32>
    %cst_54 = arith.constant dense<0.000000e+00> : vector<14x112xf32>
    %128 = tpu.matmul %125, %127, %cst_54 {dimension_numbers = #tpu.dot_dimension_numbers<[1], [0], [0], [1], [0, 0, 1, 1], [], []>} : vector<14x240xf32>, vector<240x112xf32>, vector<14x112xf32> -> vector<14x112xf32>
    %129 = arith.addf %98, %128 : vector<14x112xf32>
    %130 = tpu.iota {dimensions = array<i32: 0>} : vector<14x30xi32>
    %131 = arith.sitofp %130 : vector<14x30xi32> to vector<14x30xf32>
    %132 = tpu.iota {dimensions = array<i32: 1>} : vector<14x30xi32>
    %133 = arith.sitofp %132 : vector<14x30xi32> to vector<14x30xf32>
    %cst_55 = arith.constant 0.142857149 : f32
    %134 = vector.broadcast %cst_55 : f32 to vector<14x30xf32>
    %135 = arith.mulf %131, %134 : vector<14x30xf32>
    %136 = math.floor %135 : vector<14x30xf32>
    %cst_56 = arith.constant 0.0666666701 : f32
    %137 = vector.broadcast %cst_56 : f32 to vector<14x30xf32>
    %138 = arith.mulf %133, %137 : vector<14x30xf32>
    %139 = math.floor %138 : vector<14x30xf32>
    %cst_57 = arith.constant 7.000000e+00 : f32
    %140 = vector.broadcast %cst_57 : f32 to vector<14x30xf32>
    %141 = arith.mulf %136, %140 : vector<14x30xf32>
    %142 = arith.subf %131, %141 : vector<14x30xf32>
    %cst_58 = arith.constant 1.500000e+01 : f32
    %143 = vector.broadcast %cst_58 : f32 to vector<14x30xf32>
    %144 = arith.mulf %139, %143 : vector<14x30xf32>
    %145 = arith.subf %133, %144 : vector<14x30xf32>
    %cst_59 = arith.constant 2.000000e+00 : f32
    %146 = vector.broadcast %cst_59 : f32 to vector<14x30xf32>
    %147 = arith.mulf %146, %142 : vector<14x30xf32>
    %cst_60 = arith.constant 2.000000e+00 : f32
    %148 = vector.broadcast %cst_60 : f32 to vector<14x30xf32>
    %149 = arith.addf %147, %148 : vector<14x30xf32>
    %150 = arith.cmpf oeq, %145, %149 : vector<14x30xf32>
    %151 = arith.cmpf oeq, %136, %139 : vector<14x30xf32>
    %152 = arith.andi %151, %150 : vector<14x30xi1>
    %cst_61 = arith.constant 1.000000e+00 : f32
    %cst_62 = arith.constant 0.000000e+00 : f32
    %153 = vector.broadcast %cst_61 : f32 to vector<14x30xf32>
    %154 = vector.broadcast %cst_62 : f32 to vector<14x30xf32>
    %155 = arith.select %152, %153, %154 : vector<14x30xi1>, vector<14x30xf32>
    %cst_63 = arith.constant dense<0.000000e+00> : vector<14x240xf32>
    %156 = tpu.matmul %155, %66, %cst_63 {dimension_numbers = #tpu.dot_dimension_numbers<[1], [0], [0], [1], [0, 0, 1, 1], [], []>} : vector<14x30xf32>, vector<30x240xf32>, vector<14x240xf32> -> vector<14x240xf32>
    %c2 = arith.constant 2 : index
    %c0_64 = arith.constant 0 : index
    %c0_65 = arith.constant 0 : index
    %157 = vector.load %arg3[%c2, %c0_64, %c0_65] : memref<3x240x112xf32, #tpu.memory_space<vmem>>, vector<1x240x112xf32>
    %158 = vector.shape_cast %157 : vector<1x240x112xf32> to vector<240x112xf32>
    %cst_66 = arith.constant dense<0.000000e+00> : vector<14x112xf32>
    %159 = tpu.matmul %156, %158, %cst_66 {dimension_numbers = #tpu.dot_dimension_numbers<[1], [0], [0], [1], [0, 0, 1, 1], [], []>} : vector<14x240xf32>, vector<240x112xf32>, vector<14x112xf32> -> vector<14x112xf32>
    %160 = arith.addf %129, %159 : vector<14x112xf32>
    %c0_67 = arith.constant 0 : index
    %c0_68 = arith.constant 0 : index
    %161 = vector.load %arg4[%c0_67, %c0_68] : memref<1x112xf32, #tpu.memory_space<vmem>>, vector<1x112xf32>
    %162 = vector.broadcast %161 : vector<1x112xf32> to vector<14x112xf32>
    %163 = arith.addf %160, %162 : vector<14x112xf32>
    %cst_69 = arith.constant 0.000000e+00 : f32
    %164 = vector.broadcast %cst_69 : f32 to vector<6x48xf32>
    %165 = tpu.iota {dimensions = array<i32: 0>} : vector<6x14xi32>
    %166 = arith.sitofp %165 : vector<6x14xi32> to vector<6x14xf32>
    %167 = tpu.iota {dimensions = array<i32: 1>} : vector<6x14xi32>
    %168 = arith.sitofp %167 : vector<6x14xi32> to vector<6x14xf32>
    %cst_70 = arith.constant 0.333333343 : f32
    %169 = vector.broadcast %cst_70 : f32 to vector<6x14xf32>
    %170 = arith.mulf %166, %169 : vector<6x14xf32>
    %171 = math.floor %170 : vector<6x14xf32>
    %cst_71 = arith.constant 0.142857149 : f32
    %172 = vector.broadcast %cst_71 : f32 to vector<6x14xf32>
    %173 = arith.mulf %168, %172 : vector<6x14xf32>
    %174 = math.floor %173 : vector<6x14xf32>
    %cst_72 = arith.constant 3.000000e+00 : f32
    %175 = vector.broadcast %cst_72 : f32 to vector<6x14xf32>
    %176 = arith.mulf %171, %175 : vector<6x14xf32>
    %177 = arith.subf %166, %176 : vector<6x14xf32>
    %cst_73 = arith.constant 7.000000e+00 : f32
    %178 = vector.broadcast %cst_73 : f32 to vector<6x14xf32>
    %179 = arith.mulf %174, %178 : vector<6x14xf32>
    %180 = arith.subf %168, %179 : vector<6x14xf32>
    %cst_74 = arith.constant 2.000000e+00 : f32
    %181 = vector.broadcast %cst_74 : f32 to vector<6x14xf32>
    %182 = arith.mulf %181, %177 : vector<6x14xf32>
    %cst_75 = arith.constant 0.000000e+00 : f32
    %183 = vector.broadcast %cst_75 : f32 to vector<6x14xf32>
    %184 = arith.addf %182, %183 : vector<6x14xf32>
    %185 = arith.cmpf oeq, %180, %184 : vector<6x14xf32>
    %186 = arith.cmpf oeq, %171, %174 : vector<6x14xf32>
    %187 = arith.andi %186, %185 : vector<6x14xi1>
    %cst_76 = arith.constant 1.000000e+00 : f32
    %cst_77 = arith.constant 0.000000e+00 : f32
    %188 = vector.broadcast %cst_76 : f32 to vector<6x14xf32>
    %189 = vector.broadcast %cst_77 : f32 to vector<6x14xf32>
    %190 = arith.select %187, %188, %189 : vector<6x14xi1>, vector<6x14xf32>
    %cst_78 = arith.constant dense<0.000000e+00> : vector<6x112xf32>
    %191 = tpu.matmul %190, %163, %cst_78 {dimension_numbers = #tpu.dot_dimension_numbers<[1], [0], [0], [1], [0, 0, 1, 1], [], []>} : vector<6x14xf32>, vector<14x112xf32>, vector<6x112xf32> -> vector<6x112xf32>
    %c0_79 = arith.constant 0 : index
    %c0_80 = arith.constant 0 : index
    %c0_81 = arith.constant 0 : index
    %192 = vector.load %arg5[%c0_79, %c0_80, %c0_81] : memref<3x112x48xf32, #tpu.memory_space<vmem>>, vector<1x112x48xf32>
    %193 = vector.shape_cast %192 : vector<1x112x48xf32> to vector<112x48xf32>
    %cst_82 = arith.constant dense<0.000000e+00> : vector<6x48xf32>
    %194 = tpu.matmul %191, %193, %cst_82 {dimension_numbers = #tpu.dot_dimension_numbers<[1], [0], [0], [1], [0, 0, 1, 1], [], []>} : vector<6x112xf32>, vector<112x48xf32>, vector<6x48xf32> -> vector<6x48xf32>
    %195 = arith.addf %164, %194 : vector<6x48xf32>
    %196 = tpu.iota {dimensions = array<i32: 0>} : vector<6x14xi32>
    %197 = arith.sitofp %196 : vector<6x14xi32> to vector<6x14xf32>
    %198 = tpu.iota {dimensions = array<i32: 1>} : vector<6x14xi32>
    %199 = arith.sitofp %198 : vector<6x14xi32> to vector<6x14xf32>
    %cst_83 = arith.constant 0.333333343 : f32
    %200 = vector.broadcast %cst_83 : f32 to vector<6x14xf32>
    %201 = arith.mulf %197, %200 : vector<6x14xf32>
    %202 = math.floor %201 : vector<6x14xf32>
    %cst_84 = arith.constant 0.142857149 : f32
    %203 = vector.broadcast %cst_84 : f32 to vector<6x14xf32>
    %204 = arith.mulf %199, %203 : vector<6x14xf32>
    %205 = math.floor %204 : vector<6x14xf32>
    %cst_85 = arith.constant 3.000000e+00 : f32
    %206 = vector.broadcast %cst_85 : f32 to vector<6x14xf32>
    %207 = arith.mulf %202, %206 : vector<6x14xf32>
    %208 = arith.subf %197, %207 : vector<6x14xf32>
    %cst_86 = arith.constant 7.000000e+00 : f32
    %209 = vector.broadcast %cst_86 : f32 to vector<6x14xf32>
    %210 = arith.mulf %205, %209 : vector<6x14xf32>
    %211 = arith.subf %199, %210 : vector<6x14xf32>
    %cst_87 = arith.constant 2.000000e+00 : f32
    %212 = vector.broadcast %cst_87 : f32 to vector<6x14xf32>
    %213 = arith.mulf %212, %208 : vector<6x14xf32>
    %cst_88 = arith.constant 1.000000e+00 : f32
    %214 = vector.broadcast %cst_88 : f32 to vector<6x14xf32>
    %215 = arith.addf %213, %214 : vector<6x14xf32>
    %216 = arith.cmpf oeq, %211, %215 : vector<6x14xf32>
    %217 = arith.cmpf oeq, %202, %205 : vector<6x14xf32>
    %218 = arith.andi %217, %216 : vector<6x14xi1>
    %cst_89 = arith.constant 1.000000e+00 : f32
    %cst_90 = arith.constant 0.000000e+00 : f32
    %219 = vector.broadcast %cst_89 : f32 to vector<6x14xf32>
    %220 = vector.broadcast %cst_90 : f32 to vector<6x14xf32>
    %221 = arith.select %218, %219, %220 : vector<6x14xi1>, vector<6x14xf32>
    %cst_91 = arith.constant dense<0.000000e+00> : vector<6x112xf32>
    %222 = tpu.matmul %221, %163, %cst_91 {dimension_numbers = #tpu.dot_dimension_numbers<[1], [0], [0], [1], [0, 0, 1, 1], [], []>} : vector<6x14xf32>, vector<14x112xf32>, vector<6x112xf32> -> vector<6x112xf32>
    %c1_92 = arith.constant 1 : index
    %c0_93 = arith.constant 0 : index
    %c0_94 = arith.constant 0 : index
    %223 = vector.load %arg5[%c1_92, %c0_93, %c0_94] : memref<3x112x48xf32, #tpu.memory_space<vmem>>, vector<1x112x48xf32>
    %224 = vector.shape_cast %223 : vector<1x112x48xf32> to vector<112x48xf32>
    %cst_95 = arith.constant dense<0.000000e+00> : vector<6x48xf32>
    %225 = tpu.matmul %222, %224, %cst_95 {dimension_numbers = #tpu.dot_dimension_numbers<[1], [0], [0], [1], [0, 0, 1, 1], [], []>} : vector<6x112xf32>, vector<112x48xf32>, vector<6x48xf32> -> vector<6x48xf32>
    %226 = arith.addf %195, %225 : vector<6x48xf32>
    %227 = tpu.iota {dimensions = array<i32: 0>} : vector<6x14xi32>
    %228 = arith.sitofp %227 : vector<6x14xi32> to vector<6x14xf32>
    %229 = tpu.iota {dimensions = array<i32: 1>} : vector<6x14xi32>
    %230 = arith.sitofp %229 : vector<6x14xi32> to vector<6x14xf32>
    %cst_96 = arith.constant 0.333333343 : f32
    %231 = vector.broadcast %cst_96 : f32 to vector<6x14xf32>
    %232 = arith.mulf %228, %231 : vector<6x14xf32>
    %233 = math.floor %232 : vector<6x14xf32>
    %cst_97 = arith.constant 0.142857149 : f32
    %234 = vector.broadcast %cst_97 : f32 to vector<6x14xf32>
    %235 = arith.mulf %230, %234 : vector<6x14xf32>
    %236 = math.floor %235 : vector<6x14xf32>
    %cst_98 = arith.constant 3.000000e+00 : f32
    %237 = vector.broadcast %cst_98 : f32 to vector<6x14xf32>
    %238 = arith.mulf %233, %237 : vector<6x14xf32>
    %239 = arith.subf %228, %238 : vector<6x14xf32>
    %cst_99 = arith.constant 7.000000e+00 : f32
    %240 = vector.broadcast %cst_99 : f32 to vector<6x14xf32>
    %241 = arith.mulf %236, %240 : vector<6x14xf32>
    %242 = arith.subf %230, %241 : vector<6x14xf32>
    %cst_100 = arith.constant 2.000000e+00 : f32
    %243 = vector.broadcast %cst_100 : f32 to vector<6x14xf32>
    %244 = arith.mulf %243, %239 : vector<6x14xf32>
    %cst_101 = arith.constant 2.000000e+00 : f32
    %245 = vector.broadcast %cst_101 : f32 to vector<6x14xf32>
    %246 = arith.addf %244, %245 : vector<6x14xf32>
    %247 = arith.cmpf oeq, %242, %246 : vector<6x14xf32>
    %248 = arith.cmpf oeq, %233, %236 : vector<6x14xf32>
    %249 = arith.andi %248, %247 : vector<6x14xi1>
    %cst_102 = arith.constant 1.000000e+00 : f32
    %cst_103 = arith.constant 0.000000e+00 : f32
    %250 = vector.broadcast %cst_102 : f32 to vector<6x14xf32>
    %251 = vector.broadcast %cst_103 : f32 to vector<6x14xf32>
    %252 = arith.select %249, %250, %251 : vector<6x14xi1>, vector<6x14xf32>
    %cst_104 = arith.constant dense<0.000000e+00> : vector<6x112xf32>
    %253 = tpu.matmul %252, %163, %cst_104 {dimension_numbers = #tpu.dot_dimension_numbers<[1], [0], [0], [1], [0, 0, 1, 1], [], []>} : vector<6x14xf32>, vector<14x112xf32>, vector<6x112xf32> -> vector<6x112xf32>
    %c2_105 = arith.constant 2 : index
    %c0_106 = arith.constant 0 : index
    %c0_107 = arith.constant 0 : index
    %254 = vector.load %arg5[%c2_105, %c0_106, %c0_107] : memref<3x112x48xf32, #tpu.memory_space<vmem>>, vector<1x112x48xf32>
    %255 = vector.shape_cast %254 : vector<1x112x48xf32> to vector<112x48xf32>
    %cst_108 = arith.constant dense<0.000000e+00> : vector<6x48xf32>
    %256 = tpu.matmul %253, %255, %cst_108 {dimension_numbers = #tpu.dot_dimension_numbers<[1], [0], [0], [1], [0, 0, 1, 1], [], []>} : vector<6x112xf32>, vector<112x48xf32>, vector<6x48xf32> -> vector<6x48xf32>
    %257 = arith.addf %226, %256 : vector<6x48xf32>
    %c0_109 = arith.constant 0 : index
    %c0_110 = arith.constant 0 : index
    %258 = vector.load %arg6[%c0_109, %c0_110] : memref<1x48xf32, #tpu.memory_space<vmem>>, vector<1x48xf32>
    %259 = vector.broadcast %258 : vector<1x48xf32> to vector<6x48xf32>
    %260 = arith.addf %257, %259 : vector<6x48xf32>
    %261 = vector.shape_cast %260 : vector<6x48xf32> to vector<1x6x48xf32>
    %cst_111 = arith.constant dense<0xFF800000> : vector<1xf32>
    %262 = vector.multi_reduction <maximumf>, %261, %cst_111 [1, 2] : vector<1x6x48xf32> to vector<1xf32>
    %263 = vector.shape_cast %262 : vector<1xf32> to vector<1x1x1xf32>
    %264 = vector.extract %263[0, 0, 0] : f32 from vector<1x1x1xf32>
    %cst_112 = arith.constant 0.000000e+00 : f32
    %265 = arith.cmpf oeq, %264, %cst_112 : f32
    %cst_113 = arith.constant 1.000000e+00 : f32
    %266 = arith.select %265, %cst_113, %264 : f32
    %cst_114 = arith.constant 2.560000e+02 : f32
    %267 = arith.divf %cst_114, %266 : f32
    %268 = vector.broadcast %267 : f32 to vector<6x48xf32>
    %269 = arith.mulf %260, %268 : vector<6x48xf32>
    %cst_115 = arith.constant 0.000000e+00 : f32
    %270 = vector.broadcast %cst_115 : f32 to vector<6x48xf32>
    %271 = arith.cmpf oge, %269, %270 : vector<6x48xf32>
    %272 = math.floor %269 : vector<6x48xf32>
    %273 = math.ceil %269 : vector<6x48xf32>
    %274 = arith.select %271, %272, %273 : vector<6x48xi1>, vector<6x48xf32>
    %cst_116 = arith.constant 3.906250e-03 : f32
    %275 = arith.mulf %266, %cst_116 : f32
    %276 = vector.broadcast %275 : f32 to vector<6x48xf32>
    %277 = arith.mulf %274, %276 : vector<6x48xf32>
    %c0_117 = arith.constant 0 : index
    %c0_118 = arith.constant 0 : index
    %278 = vector.load %arg7[%c0_117, %c0_118] : memref<6x48xf32, #tpu.memory_space<vmem>>, vector<6x48xf32>
    tpu.vector_store %arg7[%c0_117, %c0_118], %277 {strides = array<i32>} : memref<6x48xf32, #tpu.memory_space<vmem>>, vector<6x48xf32>,
    return
  }
}

</mosaic_0001>

<llo_original>
// kernel: _encode_nchw.1
$region0: #{_encode_nchw.1}
  #allocation0 [shape = 'u32[]', space=smem, size = 0x4, offset = 0x4, fixed_abs, tag = 'smem constant byte address 0x4 - core index']
  #allocation1 [shape = 'u32[144,128]{1,0:T(1,128)}', space=vmem, size = 0x12000, scoped, tag = 'internal scratch']
  %s0 = inlined_call_operand.vmem [shape: f32[32,48], index: 0, kind: input, shape index: {}]
  %s1 = inlined_call_operand.vmem [shape: f32[2,48,240], index: 1, kind: input, shape index: {}]
  %s2 = inlined_call_operand.vmem [shape: f32[1,240], index: 2, kind: input, shape index: {}]
  %s3 = inlined_call_operand.vmem [shape: f32[3,240,112], index: 3, kind: input, shape index: {}]
  %s4 = inlined_call_operand.vmem [shape: f32[1,112], index: 4, kind: input, shape index: {}]
  %s5 = inlined_call_operand.vmem [shape: f32[3,112,48], index: 5, kind: input, shape index: {}]
  %s6 = inlined_call_operand.vmem [shape: f32[1,48], index: 6, kind: input, shape index: {}]
  %s7 = inlined_call_operand.vmem [shape: f32[6,48], index: 7, kind: output, shape index: {}]
  %s8 = sld [smem:[#allocation0]]
  $region38: #{_encode_nchw.1} parent=0
    _
  %s10 = ssub.s32 1, %s8
  %s11 = scalar_select 0, %s10, %s8
  // Predicated region
  $region2: #{_encode_nchw.1} parent=0 // pred_check
    _
  $region3: #{_encode_nchw.1} parent=0 // pred_check_branch
    %13 = sbr.rel (0) target = $region5
  $region4: #{_encode_nchw.1} parent=0 // pred_region
    _
  $region5: #{_encode_nchw.1} parent=0 // pred_fallthru
    _
  // Predicated region
  $region6: #{_encode_nchw.1} parent=0 // pred_check
    _
  $region7: #{_encode_nchw.1} parent=0 // pred_check_branch
    %15 = sbr.rel (0) target = $region9
  $region8: #{_encode_nchw.1} parent=0 // pred_region
    _
  $region9: #{_encode_nchw.1} parent=0 // pred_fallthru
    _
  // Predicated region
  $region10: #{_encode_nchw.1} parent=0 // pred_check
    _
  $region11: #{_encode_nchw.1} parent=0 // pred_check_branch
    %17 = sbr.rel (0) target = $region13
  $region12: #{_encode_nchw.1} parent=0 // pred_region
    _
  $region13: #{_encode_nchw.1} parent=0 // pred_fallthru
    _
  // Predicated region
  $region14: #{_encode_nchw.1} parent=0 // pred_check
    _
  $region15: #{_encode_nchw.1} parent=0 // pred_check_branch
    %19 = sbr.rel (0) target = $region17
  $region16: #{_encode_nchw.1} parent=0 // pred_region
    _
  $region17: #{_encode_nchw.1} parent=0 // pred_fallthru
    _
  // Predicated region
  $region18: #{_encode_nchw.1} parent=0 // pred_check
    _
  $region19: #{_encode_nchw.1} parent=0 // pred_check_branch
    %21 = sbr.rel (0) target = $region21
  $region20: #{_encode_nchw.1} parent=0 // pred_region
    _
  $region21: #{_encode_nchw.1} parent=0 // pred_fallthru
    _
  // Predicated region
  $region22: #{_encode_nchw.1} parent=0 // pred_check
    _
  $region23: #{_encode_nchw.1} parent=0 // pred_check_branch
    %23 = sbr.rel (0) target = $region25
  $region24: #{_encode_nchw.1} parent=0 // pred_region
    _
  $region25: #{_encode_nchw.1} parent=0 // pred_fallthru
    _
  // Predicated region
  $region26: #{_encode_nchw.1} parent=0 // pred_check
    _
  $region27: #{_encode_nchw.1} parent=0 // pred_check_branch
    %25 = sbr.rel (0) target = $region29
  $region28: #{_encode_nchw.1} parent=0 // pred_region
    _
  $region29: #{_encode_nchw.1} parent=0 // pred_fallthru
    _
  %v26 = vld [vmem:[%s0] sm:$0xff]
  %v27 = vld [vmem:[%s0 + $0x8] sm:$0xff]
  %v28 = vld [vmem:[%s0 + $0x10] sm:$0xff]
  %v29 = vld [vmem:[%s0 + $0x18] sm:$0xff]
  %v30 = vlaneseq
  %v31 = vshrl.u32 %v30, 7
  %v32 = vadd.s32 %v31, 8
  %v33 = vadd.s32 %v31, 16
  %v34 = vadd.s32 %v31, 24
  %v35 = vcvt.s32.f32 %v31
  %v36 = vcvt.s32.f32 %v32
  %v37 = vcvt.s32.f32 %v33
  %v38 = vcvt.s32.f32 %v34
  %v39 = vlaneseq
  %v40 = vand.u32 %v39, 127
  %v41 = vcvt.s32.f32 %v40
  %v42 = vmul.f32 %v35, 0.06666667
  %v43 = vmul.f32 %v36, 0.06666667
  %v44 = vmul.f32 %v37, 0.06666667
  %v45 = vmul.f32 %v38, 0.06666667
  %v46 = vfloor.f32 %v42
  %v47 = vfloor.f32 %v43
  %v48 = vfloor.f32 %v44
  %v49 = vfloor.f32 %v45
  %v50 = vmul.f32 %v41, 0.0625
  %v51 = vfloor.f32 %v50
  %v52 = vmul.f32 %v46, 15.0
  %v53 = vmul.f32 %v47, 15.0
  %v54 = vmul.f32 %v48, 15.0
  %v55 = vmul.f32 %v49, 15.0
  %v56 = vsub.f32 %v35, %v52
  %v57 = vsub.f32 %v36, %v53
  %v58 = vsub.f32 %v37, %v54
  %v59 = vsub.f32 %v38, %v55
  %v60 = vmul.f32 %v51, 16.0
  %v61 = vsub.f32 %v41, %v60
  %v62 = vadd.f32 %v56, 0.0
  %v63 = vadd.f32 %v57, 0.0
  %v64 = vadd.f32 %v58, 0.0
  %v65 = vadd.f32 %v59, 0.0
  %vm66 = vcmp.eq.f32.partialorder %v61, %v62
  %vm67 = vcmp.eq.f32.partialorder %v61, %v63
  %vm68 = vcmp.eq.f32.partialorder %v61, %v64
  %vm69 = vcmp.eq.f32.partialorder %v61, %v65
  %vm70 = vcmp.eq.f32.partialorder %v46, %v51
  %vm71 = vcmp.eq.f32.partialorder %v47, %v51
  %vm72 = vcmp.eq.f32.partialorder %v48, %v51
  %vm73 = vcmp.eq.f32.partialorder %v49, %v51
  %vm74 = vmand %vm70, %vm66
  %vm75 = vmand %vm71, %vm67
  %vm76 = vmand %vm72, %vm68
  %vm77 = vmand %vm73, %vm69
  %v78 = vsel %vm74, 1.0, 0.0
  %v79 = vsel %vm75, 1.0, 0.0
  %v80 = vsel %vm76, 1.0, 0.0
  %v81 = vsel %vm77, 1.0, 0.0
  %vm82 = vcmask 261120
  %v84 = vsel %vm82, %v78, 0
  %v87 = vsel %vm82, %v79, 0
  %v90 = vsel %vm82, %v80, 0
  %v93 = vsel %vm82, %v81, 0
  %95 = vmatprep.subr.mxu0 0.0
  %96 = vmatpush1.msra.mxu0 0.0
  %97 = vmatprep.subr.mxu0 0.0
  %98 = vmatpush1.msra.mxu0 0.0
  %99 = vmatprep.subr.mxu0 0.0
  %100 = vmatpush1.msra.mxu0 0.0
  %101 = vmatprep.subr.mxu0 0.0
  %102 = vmatpush1.msra.mxu0 0.0
  %103 = vmatprep.subr.mxu0 0.0
  %104 = vmatpush1.msra.mxu0 0.0
  %105 = vmatprep.subr.mxu0 0.0
  %106 = vmatpush1.msra.mxu0 0.0
  %107 = vmatprep.subr.mxu0 0.0
  %108 = vmatpush1.msra.mxu0 0.0
  %109 = vmatprep.subr.mxu0 0.0
  %110 = vmatpush1.msra.mxu0 0.0
  %111 = vmatprep.subr.mxu0 0.0
  %112 = vmatpush1.msra.mxu0 0.0
  %113 = vmatprep.subr.mxu0 0.0
  %114 = vmatpush1.msra.mxu0 0.0
  %115 = vmatprep.subr.mxu0 0.0
  %116 = vmatpush1.msra.mxu0 0.0
  %117 = vmatprep.subr.mxu0 0.0
  %118 = vmatpush1.msra.mxu0 0.0
  %119 = vmatprep.subr.mxu0 0.0
  %120 = vmatpush1.msra.mxu0 %v29
  %121 = vmatprep.subr.mxu0 0.0
  %122 = vmatpush1.msra.mxu0 %v28
  %123 = vmatprep.subr.mxu0 0.0
  %124 = vmatpush1.msra.mxu0 %v27
  %125 = vmatprep.subr.mxu0 0.0
  %126 = vmatpush1.msra.mxu0 %v26
  %127 = vmatprep.subr.mxu0 0.0
  %128 = vmatpush2.msra.mxu0 0.0
  %129 = vmatprep.subr.mxu0 0.0
  %130 = vmatpush2.msra.mxu0 0.0
  %131 = vmatprep.subr.mxu0 0.0
  %132 = vmatpush2.msra.mxu0 0.0
  %133 = vmatprep.subr.mxu0 0.0
  %134 = vmatpush2.msra.mxu0 0.0
  %135 = vmatprep.subr.mxu0 0.0
  %136 = vmatpush2.msra.mxu0 0.0
  %137 = vmatprep.subr.mxu0 0.0
  %138 = vmatpush2.msra.mxu0 0.0
  %139 = vmatprep.subr.mxu0 0.0
  %140 = vmatpush2.msra.mxu0 0.0
  %141 = vmatprep.subr.mxu0 0.0
  %142 = vmatpush2.msra.mxu0 0.0
  %143 = vmatprep.subr.mxu0 0.0
  %144 = vmatpush2.msra.mxu0 0.0
  %145 = vmatprep.subr.mxu0 0.0
  %146 = vmatpush2.msra.mxu0 0.0
  %147 = vmatprep.subr.mxu0 0.0
  %148 = vmatpush2.msra.mxu0 0.0
  %149 = vmatprep.subr.mxu0 0.0
  %150 = vmatpush2.msra.mxu0 0.0
  %151 = vmatprep.subr.mxu0 0.0
  %152 = vmatpush2.msra.mxu0 0.0
  %153 = vmatprep.subr.mxu0 0.0
  %154 = vmatpush2.msra.mxu0 0.0
  %155 = vmatprep.subr.mxu0 0.0
  %156 = vmatpush2.msra.mxu0 0.0
  %157 = vmatprep.subr.mxu0 0.0
  %158 = vmatpush2.msra.mxu0 0.0
  %159 = vmatprep.mubr.f32.mxu0 0.0
  %160 = vmatmul.mubr.f32.gmra.mxu0 %v84
  %v161 = vpop.f32.mrf.mxu0
  %v162 = vadd.f32 0.0, %v161
  %v163 = vpop.f32.mrf.mxu0
  %164 = vmatprep.mubr.f32.mxu0 0.0
  %165 = vmatmul.mubr.f32.gmra.mxu0 %v87
  %v166 = vpop.f32.mrf.mxu0
  %v167 = vadd.f32 0.0, %v166
  %v168 = vpop.f32.mrf.mxu0
  %169 = vmatprep.mubr.f32.mxu0 0.0
  %170 = vmatmul.mubr.f32.gmra.mxu0 %v90
  %v171 = vpop.f32.mrf.mxu0
  %v172 = vadd.f32 0.0, %v171
  %v173 = vpop.f32.mrf.mxu0
  %174 = vmatprep.mubr.f32.mxu0 0.0
  %175 = vmatmul.mubr.f32.gmra.mxu0 %v93
  %v176 = vpop.f32.mrf.mxu0
  %v177 = vadd.f32 0.0, %v176
  %v178 = vpop.f32.mrf.mxu0
  %179 = vdwg.mxu0
  %v180 = vld [vmem:[%s1] sm:$0xff]
  %v181 = vld [vmem:[%s1 + $0x8] sm:$0xff]
  %v182 = vld [vmem:[%s1 + $0x10] sm:$0xff]
  %v183 = vld [vmem:[%s1 + $0x18] sm:$0xff]
  %v184 = vld [vmem:[%s1 + $0x20] sm:$0xff]
  %v185 = vld [vmem:[%s1 + $0x28] sm:$0xff]
  %v186 = vld [vmem:[%s1 + $0x30] sm:$0xff]
  %v187 = vld [vmem:[%s1 + $0x38] sm:$0xff]
  %v188 = vld [vmem:[%s1 + $0x40] sm:$0xff]
  %v189 = vld [vmem:[%s1 + $0x48] sm:$0xff]
  %v190 = vld [vmem:[%s1 + $0x50] sm:$0xff]
  %v191 = vld [vmem:[%s1 + $0x58] sm:$0xff]
  %v192 = vadd.f32 %v56, 1.0
  %v193 = vadd.f32 %v57, 1.0
  %v194 = vadd.f32 %v58, 1.0
  %v195 = vadd.f32 %v59, 1.0
  %vm196 = vcmp.eq.f32.partialorder %v61, %v192
  %vm197 = vcmp.eq.f32.partialorder %v61, %v193
  %vm198 = vcmp.eq.f32.partialorder %v61, %v194
  %vm199 = vcmp.eq.f32.partialorder %v61, %v195
  %vm200 = vmand %vm70, %vm196
  %vm201 = vmand %vm71, %vm197
  %vm202 = vmand %vm72, %vm198
  %vm203 = vmand %vm73, %vm199
  %v204 = vsel %vm200, 1.0, 0.0
  %v205 = vsel %vm201, 1.0, 0.0
  %v206 = vsel %vm202, 1.0, 0.0
  %v207 = vsel %vm203, 1.0, 0.0
  %v209 = vsel %vm82, %v204, 0
  %v212 = vsel %vm82, %v205, 0
  %v215 = vsel %vm82, %v206, 0
  %v218 = vsel %vm82, %v207, 0
  %220 = vmatprep.subr.mxu0 0.0
  %221 = vmatpush1.msra.mxu0 0.0
  %222 = vmatprep.subr.mxu0 0.0
  %223 = vmatpush1.msra.mxu0 0.0
  %224 = vmatprep.subr.mxu0 0.0
  %225 = vmatpush1.msra.mxu0 0.0
  %226 = vmatprep.subr.mxu0 0.0
  %227 = vmatpush1.msra.mxu0 0.0
  %228 = vmatprep.subr.mxu0 0.0
  %229 = vmatpush1.msra.mxu0 0.0
  %230 = vmatprep.subr.mxu0 0.0
  %231 = vmatpush1.msra.mxu0 0.0
  %232 = vmatprep.subr.mxu0 0.0
  %233 = vmatpush1.msra.mxu0 0.0
  %234 = vmatprep.subr.mxu0 0.0
  %235 = vmatpush1.msra.mxu0 0.0
  %236 = vmatprep.subr.mxu0 0.0
  %237 = vmatpush1.msra.mxu0 0.0
  %238 = vmatprep.subr.mxu0 0.0
  %239 = vmatpush1.msra.mxu0 0.0
  %240 = vmatprep.subr.mxu0 0.0
  %241 = vmatpush1.msra.mxu0 0.0
  %242 = vmatprep.subr.mxu0 0.0
  %243 = vmatpush1.msra.mxu0 0.0
  %244 = vmatprep.subr.mxu0 0.0
  %245 = vmatpush1.msra.mxu0 %v29
  %246 = vmatprep.subr.mxu0 0.0
  %247 = vmatpush1.msra.mxu0 %v28
  %248 = vmatprep.subr.mxu0 0.0
  %249 = vmatpush1.msra.mxu0 %v27
  %250 = vmatprep.subr.mxu0 0.0
  %251 = vmatpush1.msra.mxu0 %v26
  %252 = vmatprep.subr.mxu0 0.0
  %253 = vmatpush2.msra.mxu0 0.0
  %254 = vmatprep.subr.mxu0 0.0
  %255 = vmatpush2.msra.mxu0 0.0
  %256 = vmatprep.subr.mxu0 0.0
  %257 = vmatpush2.msra.mxu0 0.0
  %258 = vmatprep.subr.mxu0 0.0
  %259 = vmatpush2.msra.mxu0 0.0
  %260 = vmatprep.subr.mxu0 0.0
  %261 = vmatpush2.msra.mxu0 0.0
  %262 = vmatprep.subr.mxu0 0.0
  %263 = vmatpush2.msra.mxu0 0.0
  %264 = vmatprep.subr.mxu0 0.0
  %265 = vmatpush2.msra.mxu0 0.0
  %266 = vmatprep.subr.mxu0 0.0
  %267 = vmatpush2.msra.mxu0 0.0
  %268 = vmatprep.subr.mxu0 0.0
  %269 = vmatpush2.msra.mxu0 0.0
  %270 = vmatprep.subr.mxu0 0.0
  %271 = vmatpush2.msra.mxu0 0.0
  %272 = vmatprep.subr.mxu0 0.0
  %273 = vmatpush2.msra.mxu0 0.0
  %274 = vmatprep.subr.mxu0 0.0
  %275 = vmatpush2.msra.mxu0 0.0
  %276 = vmatprep.subr.mxu0 0.0
  %277 = vmatpush2.msra.mxu0 0.0
  %278 = vmatprep.subr.mxu0 0.0
  %279 = vmatpush2.msra.mxu0 0.0
  %280 = vmatprep.subr.mxu0 0.0
  %281 = vmatpush2.msra.mxu0 0.0
  %282 = vmatprep.subr.mxu0 0.0
  %283 = vmatpush2.msra.mxu0 0.0
  %284 = vmatprep.mubr.f32.mxu0 0.0
  %285 = vmatmul.mubr.f32.gmra.mxu0 %v209
  %v286 = vpop.f32.mrf.mxu0
  %v287 = vadd.f32 0.0, %v286
  %v288 = vpop.f32.mrf.mxu0
  %289 = vmatprep.mubr.f32.mxu0 0.0
  %290 = vmatmul.mubr.f32.gmra.mxu0 %v212
  %v291 = vpop.f32.mrf.mxu0
  %v292 = vadd.f32 0.0, %v291
  %v293 = vpop.f32.mrf.mxu0
  %294 = vmatprep.mubr.f32.mxu0 0.0
  %295 = vmatmul.mubr.f32.gmra.mxu0 %v215
  %v296 = vpop.f32.mrf.mxu0
  %v297 = vadd.f32 0.0, %v296
  %v298 = vpop.f32.mrf.mxu0
  %299 = vmatprep.mubr.f32.mxu0 0.0
  %300 = vmatmul.mubr.f32.gmra.mxu0 %v218
  %v301 = vpop.f32.mrf.mxu0
  %v302 = vadd.f32 0.0, %v301
  %v303 = vpop.f32.mrf.mxu0
  %304 = vdwg.mxu0
  %s305 = scalar_lea.vmem %s1, 96
  %v306 = vld [vmem:[%s305] sm:$0xff]
  %v307 = vld [vmem:[%s305 + $0x8] sm:$0xff]
  %v308 = vld [vmem:[%s305 + $0x10] sm:$0xff]
  %v309 = vld [vmem:[%s305 + $0x18] sm:$0xff]
  %v310 = vld [vmem:[%s305 + $0x20] sm:$0xff]
  %v311 = vld [vmem:[%s305 + $0x28] sm:$0xff]
  %v312 = vld [vmem:[%s305 + $0x30] sm:$0xff]
  %v313 = vld [vmem:[%s305 + $0x38] sm:$0xff]
  %v314 = vld [vmem:[%s305 + $0x40] sm:$0xff]
  %v315 = vld [vmem:[%s305 + $0x48] sm:$0xff]
  %v316 = vld [vmem:[%s305 + $0x50] sm:$0xff]
  %v317 = vld [vmem:[%s305 + $0x58] sm:$0xff]
  %vm318 = vcmask 392192
  %v320 = vsel %vm318, %v287, 0
  %v323 = vsel %vm318, %v292, 0
  %v326 = vsel %vm318, %v297, 0
  %v329 = vsel %vm318, %v302, 0
  %331 = vmatprep.subr.mxu0 0.0
  %332 = vmatpush1.msra.mxu0 0.0
  %333 = vmatprep.subr.mxu0 0.0
  %334 = vmatpush1.msra.mxu0 0.0
  %335 = vmatprep.subr.mxu0 0.0
  %336 = vmatpush1.msra.mxu0 0.0
  %337 = vmatprep.subr.mxu0 0.0
  %338 = vmatpush1.msra.mxu0 0.0
  %339 = vmatprep.subr.mxu0 0.0
  %340 = vmatpush1.msra.mxu0 0.0
  %341 = vmatprep.subr.mxu0 0.0
  %342 = vmatpush1.msra.mxu0 0.0
  %343 = vmatprep.subr.mxu0 0.0
  %344 = vmatpush1.msra.mxu0 0.0
  %345 = vmatprep.subr.mxu0 0.0
  %346 = vmatpush1.msra.mxu0 0.0
  %347 = vmatprep.subr.mxu0 0.0
  %348 = vmatpush1.msra.mxu0 0.0
  %349 = vmatprep.subr.mxu0 0.0
  %350 = vmatpush1.msra.mxu0 0.0
  %351 = vmatprep.subr.mxu0 %v317
  %352 = vmatpush1.msra.mxu0 %v316
  %353 = vmatprep.subr.mxu0 %v315
  %354 = vmatpush1.msra.mxu0 %v314
  %355 = vmatprep.subr.mxu0 %v313
  %356 = vmatpush1.msra.mxu0 %v312
  %357 = vmatprep.subr.mxu0 %v311
  %358 = vmatpush1.msra.mxu0 %v310
  %359 = vmatprep.subr.mxu0 %v309
  %360 = vmatpush1.msra.mxu0 %v308
  %361 = vmatprep.subr.mxu0 %v307
  %362 = vmatpush1.msra.mxu0 %v306
  %363 = vmatprep.subr.mxu0 0.0
  %364 = vmatpush2.msra.mxu0 0.0
  %365 = vmatprep.subr.mxu0 0.0
  %366 = vmatpush2.msra.mxu0 0.0
  %367 = vmatprep.subr.mxu0 0.0
  %368 = vmatpush2.msra.mxu0 0.0
  %369 = vmatprep.subr.mxu0 0.0
  %370 = vmatpush2.msra.mxu0 0.0
  %371 = vmatprep.subr.mxu0 0.0
  %372 = vmatpush2.msra.mxu0 0.0
  %373 = vmatprep.subr.mxu0 0.0
  %374 = vmatpush2.msra.mxu0 0.0
  %375 = vmatprep.subr.mxu0 0.0
  %376 = vmatpush2.msra.mxu0 0.0
  %377 = vmatprep.subr.mxu0 0.0
  %378 = vmatpush2.msra.mxu0 0.0
  %379 = vmatprep.subr.mxu0 0.0
  %380 = vmatpush2.msra.mxu0 0.0
  %381 = vmatprep.subr.mxu0 0.0
  %382 = vmatpush2.msra.mxu0 0.0
  %383 = vmatprep.subr.mxu0 0.0
  %384 = vmatpush2.msra.mxu0 0.0
  %385 = vmatprep.subr.mxu0 0.0
  %386 = vmatpush2.msra.mxu0 0.0
  %387 = vmatprep.subr.mxu0 0.0
  %388 = vmatpush2.msra.mxu0 0.0
  %389 = vmatprep.subr.mxu0 0.0
  %390 = vmatpush2.msra.mxu0 0.0
  %391 = vmatprep.subr.mxu0 0.0
  %392 = vmatpush2.msra.mxu0 0.0
  %393 = vmatprep.subr.mxu0 0.0
  %394 = vmatpush2.msra.mxu0 0.0
  %395 = vmatprep.mubr.f32.mxu0 0.0
  %396 = vmatmul.mubr.f32.gmra.mxu0 %v320
  %v397 = vpop.f32.mrf.mxu0
  %v398 = vadd.f32 0.0, %v397
  %v399 = vpop.f32.mrf.mxu0
  %v400 = vadd.f32 0.0, %v399
  %401 = vmatprep.mubr.f32.mxu0 0.0
  %402 = vmatmul.mubr.f32.gmra.mxu0 %v323
  %v403 = vpop.f32.mrf.mxu0
  %v404 = vadd.f32 0.0, %v403
  %v405 = vpop.f32.mrf.mxu0
  %v406 = vadd.f32 0.0, %v405
  %407 = vmatprep.mubr.f32.mxu0 0.0
  %408 = vmatmul.mubr.f32.gmra.mxu0 %v326
  %v409 = vpop.f32.mrf.mxu0
  %v410 = vadd.f32 0.0, %v409
  %v411 = vpop.f32.mrf.mxu0
  %v412 = vadd.f32 0.0, %v411
  %413 = vmatprep.mubr.f32.mxu0 0.0
  %414 = vmatmul.mubr.f32.gmra.mxu0 %v329
  %v415 = vpop.f32.mrf.mxu0
  %v416 = vadd.f32 0.0, %v415
  %v417 = vpop.f32.mrf.mxu0
  %v418 = vadd.f32 0.0, %v417
  %419 = vdwg.mxu0
  %v421 = vsel %vm318, %v162, 0
  %v424 = vsel %vm318, %v167, 0
  %v427 = vsel %vm318, %v172, 0
  %v430 = vsel %vm318, %v177, 0
  %432 = vmatprep.subr.mxu0 0.0
  %433 = vmatpush1.msra.mxu0 0.0
  %434 = vmatprep.subr.mxu0 0.0
  %435 = vmatpush1.msra.mxu0 0.0
  %436 = vmatprep.subr.mxu0 0.0
  %437 = vmatpush1.msra.mxu0 0.0
  %438 = vmatprep.subr.mxu0 0.0
  %439 = vmatpush1.msra.mxu0 0.0
  %440 = vmatprep.subr.mxu0 0.0
  %441 = vmatpush1.msra.mxu0 0.0
  %442 = vmatprep.subr.mxu0 0.0
  %443 = vmatpush1.msra.mxu0 0.0
  %444 = vmatprep.subr.mxu0 0.0
  %445 = vmatpush1.msra.mxu0 0.0
  %446 = vmatprep.subr.mxu0 0.0
  %447 = vmatpush1.msra.mxu0 0.0
  %448 = vmatprep.subr.mxu0 0.0
  %449 = vmatpush1.msra.mxu0 0.0
  %450 = vmatprep.subr.mxu0 0.0
  %451 = vmatpush1.msra.mxu0 0.0
  %452 = vmatprep.subr.mxu0 %v191
  %453 = vmatpush1.msra.mxu0 %v190
  %454 = vmatprep.subr.mxu0 %v189
  %455 = vmatpush1.msra.mxu0 %v188
  %456 = vmatprep.subr.mxu0 %v187
  %457 = vmatpush1.msra.mxu0 %v186
  %458 = vmatprep.subr.mxu0 %v185
  %459 = vmatpush1.msra.mxu0 %v184
  %460 = vmatprep.subr.mxu0 %v183
  %461 = vmatpush1.msra.mxu0 %v182
  %462 = vmatprep.subr.mxu0 %v181
  %463 = vmatpush1.msra.mxu0 %v180
  %464 = vmatprep.subr.mxu0 0.0
  %465 = vmatpush2.msra.mxu0 0.0
  %466 = vmatprep.subr.mxu0 0.0
  %467 = vmatpush2.msra.mxu0 0.0
  %468 = vmatprep.subr.mxu0 0.0
  %469 = vmatpush2.msra.mxu0 0.0
  %470 = vmatprep.subr.mxu0 0.0
  %471 = vmatpush2.msra.mxu0 0.0
  %472 = vmatprep.subr.mxu0 0.0
  %473 = vmatpush2.msra.mxu0 0.0
  %474 = vmatprep.subr.mxu0 0.0
  %475 = vmatpush2.msra.mxu0 0.0
  %476 = vmatprep.subr.mxu0 0.0
  %477 = vmatpush2.msra.mxu0 0.0
  %478 = vmatprep.subr.mxu0 0.0
  %479 = vmatpush2.msra.mxu0 0.0
  %480 = vmatprep.subr.mxu0 0.0
  %481 = vmatpush2.msra.mxu0 0.0
  %482 = vmatprep.subr.mxu0 0.0
  %483 = vmatpush2.msra.mxu0 0.0
  %484 = vmatprep.subr.mxu0 0.0
  %485 = vmatpush2.msra.mxu0 0.0
  %486 = vmatprep.subr.mxu0 0.0
  %487 = vmatpush2.msra.mxu0 0.0
  %488 = vmatprep.subr.mxu0 0.0
  %489 = vmatpush2.msra.mxu0 0.0
  %490 = vmatprep.subr.mxu0 0.0
  %491 = vmatpush2.msra.mxu0 0.0
  %492 = vmatprep.subr.mxu0 0.0
  %493 = vmatpush2.msra.mxu0 0.0
  %494 = vmatprep.subr.mxu0 0.0
  %495 = vmatpush2.msra.mxu0 0.0
  %496 = vmatprep.mubr.f32.mxu0 0.0
  %497 = vmatmul.mubr.f32.gmra.mxu0 %v421
  %v498 = vpop.f32.mrf.mxu0
  %v499 = vadd.f32 %v398, %v498
  %v500 = vpop.f32.mrf.mxu0
  %v501 = vadd.f32 %v400, %v500
  %502 = vmatprep.mubr.f32.mxu0 0.0
  %503 = vmatmul.mubr.f32.gmra.mxu0 %v424
  %v504 = vpop.f32.mrf.mxu0
  %v505 = vadd.f32 %v404, %v504
  %v506 = vpop.f32.mrf.mxu0
  %v507 = vadd.f32 %v406, %v506
  %508 = vmatprep.mubr.f32.mxu0 0.0
  %509 = vmatmul.mubr.f32.gmra.mxu0 %v427
  %v510 = vpop.f32.mrf.mxu0
  %v511 = vadd.f32 %v410, %v510
  %v512 = vpop.f32.mrf.mxu0
  %v513 = vadd.f32 %v412, %v512
  %514 = vmatprep.mubr.f32.mxu0 0.0
  %515 = vmatmul.mubr.f32.gmra.mxu0 %v430
  %v516 = vpop.f32.mrf.mxu0
  %v517 = vadd.f32 %v416, %v516
  %v518 = vpop.f32.mrf.mxu0
  %v519 = vadd.f32 %v418, %v518
  %520 = vdwg.mxu0
  %v521 = vld [vmem:[%s2] sm:$0x3]
  %v523 = vlaneseq
  %v524 = vshrl.u32 %v523, 7
  %v525 = vsub.s32 0, %v524
  %v526 = vrot.slane %v521, %v525
  %v527 = vlaneseq
  %v528 = vshrl.u32 %v527, 7
  %v529 = vsub.s32 1, %v528
  %v530 = vrot.slane %v521, %v529
  %v533 = vadd.f32 %v499, %v526
  %v534 = vadd.f32 %v501, %v530
  %v535 = vadd.f32 %v505, %v526
  %v536 = vadd.f32 %v507, %v530
  %v537 = vadd.f32 %v511, %v526
  %v538 = vadd.f32 %v513, %v530
  %v539 = vadd.f32 %v517, %v526
  %v540 = vadd.f32 %v519, %v530
  %v541 = vmul.f32 %v35, 0.14285715
  %v542 = vmul.f32 %v36, 0.14285715
  %v543 = vfloor.f32 %v541
  %v544 = vfloor.f32 %v542
  %v545 = vmul.f32 %v41, 0.06666667
  %v546 = vfloor.f32 %v545
  %v547 = vmul.f32 %v543, 7.0
  %v548 = vmul.f32 %v544, 7.0
  %v549 = vsub.f32 %v35, %v547
  %v550 = vsub.f32 %v36, %v548
  %v551 = vmul.f32 %v546, 15.0
  %v552 = vsub.f32 %v41, %v551
  %v553 = vmul.f32 %v549, 2.0
  %v554 = vmul.f32 %v550, 2.0
  %v555 = vadd.f32 %v553, 0.0
  %v556 = vadd.f32 %v554, 0.0
  %vm557 = vcmp.eq.f32.partialorder %v552, %v555
  %vm558 = vcmp.eq.f32.partialorder %v552, %v556
  %vm559 = vcmp.eq.f32.partialorder %v543, %v546
  %vm560 = vcmp.eq.f32.partialorder %v544, %v546
  %vm561 = vmand %vm559, %vm557
  %vm562 = vmand %vm560, %vm558
  %v563 = vsel %vm561, 1.0, 0.0
  %v564 = vsel %vm562, 1.0, 0.0
  %vm565 = vcmask 244736
  %v567 = vsel %vm565, %v563, 0
  %v570 = vsel %vm565, %v564, 0
  %vm572 = vcmask 1045504
  %v574 = vsel %vm572, %v539, 0
  %v577 = vsel %vm572, %v540, 0
  %579 = vmatprep.subr.mxu0 0.0
  %580 = vmatpush1.msra.mxu0 0.0
  %581 = vmatprep.subr.mxu0 0.0
  %582 = vmatpush1.msra.mxu0 0.0
  %583 = vmatprep.subr.mxu0 0.0
  %584 = vmatpush1.msra.mxu0 0.0
  %585 = vmatprep.subr.mxu0 0.0
  %586 = vmatpush1.msra.mxu0 0.0
  %587 = vmatprep.subr.mxu0 0.0
  %588 = vmatpush1.msra.mxu0 0.0
  %589 = vmatprep.subr.mxu0 0.0
  %590 = vmatpush1.msra.mxu0 0.0
  %591 = vmatprep.subr.mxu0 0.0
  %592 = vmatpush1.msra.mxu0 0.0
  %593 = vmatprep.subr.mxu0 0.0
  %594 = vmatpush1.msra.mxu0 0.0
  %595 = vmatprep.subr.mxu0 0.0
  %596 = vmatpush1.msra.mxu0 0.0
  %597 = vmatprep.subr.mxu0 0.0
  %598 = vmatpush1.msra.mxu0 0.0
  %599 = vmatprep.subr.mxu0 0.0
  %600 = vmatpush1.msra.mxu0 0.0
  %601 = vmatprep.subr.mxu0 0.0
  %602 = vmatpush1.msra.mxu0 0.0
  %603 = vmatprep.subr.mxu0 %v577
  %604 = vmatpush1.msra.mxu0 %v574
  %605 = vmatprep.subr.mxu0 %v538
  %606 = vmatpush1.msra.mxu0 %v537
  %607 = vmatprep.subr.mxu0 %v536
  %608 = vmatpush1.msra.mxu0 %v535
  %609 = vmatprep.subr.mxu0 %v534
  %610 = vmatpush1.msra.mxu0 %v533
  %611 = vmatprep.subr.mxu0 0.0
  %612 = vmatpush2.msra.mxu0 0.0
  %613 = vmatprep.subr.mxu0 0.0
  %614 = vmatpush2.msra.mxu0 0.0
  %615 = vmatprep.subr.mxu0 0.0
  %616 = vmatpush2.msra.mxu0 0.0
  %617 = vmatprep.subr.mxu0 0.0
  %618 = vmatpush2.msra.mxu0 0.0
  %619 = vmatprep.subr.mxu0 0.0
  %620 = vmatpush2.msra.mxu0 0.0
  %621 = vmatprep.subr.mxu0 0.0
  %622 = vmatpush2.msra.mxu0 0.0
  %623 = vmatprep.subr.mxu0 0.0
  %624 = vmatpush2.msra.mxu0 0.0
  %625 = vmatprep.subr.mxu0 0.0
  %626 = vmatpush2.msra.mxu0 0.0
  %627 = vmatprep.subr.mxu0 0.0
  %628 = vmatpush2.msra.mxu0 0.0
  %629 = vmatprep.subr.mxu0 0.0
  %630 = vmatpush2.msra.mxu0 0.0
  %631 = vmatprep.subr.mxu0 0.0
  %632 = vmatpush2.msra.mxu0 0.0
  %633 = vmatprep.subr.mxu0 0.0
  %634 = vmatpush2.msra.mxu0 0.0
  %635 = vmatprep.subr.mxu0 0.0
  %636 = vmatpush2.msra.mxu0 0.0
  %637 = vmatprep.subr.mxu0 0.0
  %638 = vmatpush2.msra.mxu0 0.0
  %639 = vmatprep.subr.mxu0 0.0
  %640 = vmatpush2.msra.mxu0 0.0
  %641 = vmatprep.subr.mxu0 0.0
  %642 = vmatpush2.msra.mxu0 0.0
  %643 = vmatprep.mubr.f32.mxu0 0.0
  %644 = vmatmul.mubr.f32.gmra.mxu0 %v567
  %v645 = vpop.f32.mrf.mxu0
  %v646 = vadd.f32 0.0, %v645
  %v647 = vpop.f32.mrf.mxu0
  %v648 = vadd.f32 0.0, %v647
  %649 = vmatprep.mubr.f32.mxu0 0.0
  %650 = vmatmul.mubr.f32.gmra.mxu0 %v570
  %v651 = vpop.f32.mrf.mxu0
  %v652 = vadd.f32 0.0, %v651
  %v653 = vpop.f32.mrf.mxu0
  %v654 = vadd.f32 0.0, %v653
  %655 = vdwg.mxu0
  %v656 = vld [vmem:[%s3] sm:$0xff]
  %v657 = vld [vmem:[%s3 + $0x8] sm:$0xff]
  %v658 = vld [vmem:[%s3 + $0x10] sm:$0xff]
  %v659 = vld [vmem:[%s3 + $0x18] sm:$0xff]
  %v660 = vld [vmem:[%s3 + $0x20] sm:$0xff]
  %v661 = vld [vmem:[%s3 + $0x28] sm:$0xff]
  %v662 = vld [vmem:[%s3 + $0x30] sm:$0xff]
  %v663 = vld [vmem:[%s3 + $0x38] sm:$0xff]
  %v664 = vld [vmem:[%s3 + $0x40] sm:$0xff]
  %v665 = vld [vmem:[%s3 + $0x48] sm:$0xff]
  %v666 = vld [vmem:[%s3 + $0x50] sm:$0xff]
  %v667 = vld [vmem:[%s3 + $0x58] sm:$0xff]
  %v668 = vld [vmem:[%s3 + $0x60] sm:$0xff]
  %v669 = vld [vmem:[%s3 + $0x68] sm:$0xff]
  %v670 = vld [vmem:[%s3 + $0x70] sm:$0xff]
  %v671 = vld [vmem:[%s3 + $0x78] sm:$0xff]
  %v672 = vld [vmem:[%s3 + $0x80] sm:$0xff]
  %v673 = vld [vmem:[%s3 + $0x88] sm:$0xff]
  %v674 = vld [vmem:[%s3 + $0x90] sm:$0xff]
  %v675 = vld [vmem:[%s3 + $0x98] sm:$0xff]
  %v676 = vld [vmem:[%s3 + $0xa0] sm:$0xff]
  %v677 = vld [vmem:[%s3 + $0xa8] sm:$0xff]
  %v678 = vld [vmem:[%s3 + $0xb0] sm:$0xff]
  %v679 = vld [vmem:[%s3 + $0xb8] sm:$0xff]
  %v680 = vld [vmem:[%s3 + $0xc0] sm:$0xff]
  %v681 = vld [vmem:[%s3 + $0xc8] sm:$0xff]
  %v682 = vld [vmem:[%s3 + $0xd0] sm:$0xff]
  %v683 = vld [vmem:[%s3 + $0xd8] sm:$0xff]
  %v684 = vld [vmem:[%s3 + $0xe0] sm:$0xff]
  %v685 = vld [vmem:[%s3 + $0xe8] sm:$0xff]
  %v686 = vadd.f32 %v553, 1.0
  %v687 = vadd.f32 %v554, 1.0
  %vm688 = vcmp.eq.f32.partialorder %v552, %v686
  %vm689 = vcmp.eq.f32.partialorder %v552, %v687
  %vm690 = vmand %vm559, %vm688
  %vm691 = vmand %vm560, %vm689
  %v692 = vsel %vm690, 1.0, 0.0
  %v693 = vsel %vm691, 1.0, 0.0
  %v695 = vsel %vm565, %v692, 0
  %v698 = vsel %vm565, %v693, 0
  %700 = vmatprep.subr.mxu0 0.0
  %701 = vmatpush1.msra.mxu0 0.0
  %702 = vmatprep.subr.mxu0 0.0
  %703 = vmatpush1.msra.mxu0 0.0
  %704 = vmatprep.subr.mxu0 0.0
  %705 = vmatpush1.msra.mxu0 0.0
  %706 = vmatprep.subr.mxu0 0.0
  %707 = vmatpush1.msra.mxu0 0.0
  %708 = vmatprep.subr.mxu0 0.0
  %709 = vmatpush1.msra.mxu0 0.0
  %710 = vmatprep.subr.mxu0 0.0
  %711 = vmatpush1.msra.mxu0 0.0
  %712 = vmatprep.subr.mxu0 0.0
  %713 = vmatpush1.msra.mxu0 0.0
  %714 = vmatprep.subr.mxu0 0.0
  %715 = vmatpush1.msra.mxu0 0.0
  %716 = vmatprep.subr.mxu0 0.0
  %717 = vmatpush1.msra.mxu0 0.0
  %718 = vmatprep.subr.mxu0 0.0
  %719 = vmatpush1.msra.mxu0 0.0
  %720 = vmatprep.subr.mxu0 0.0
  %721 = vmatpush1.msra.mxu0 0.0
  %722 = vmatprep.subr.mxu0 0.0
  %723 = vmatpush1.msra.mxu0 0.0
  %724 = vmatprep.subr.mxu0 %v577
  %725 = vmatpush1.msra.mxu0 %v574
  %726 = vmatprep.subr.mxu0 %v538
  %727 = vmatpush1.msra.mxu0 %v537
  %728 = vmatprep.subr.mxu0 %v536
  %729 = vmatpush1.msra.mxu0 %v535
  %730 = vmatprep.subr.mxu0 %v534
  %731 = vmatpush1.msra.mxu0 %v533
  %732 = vmatprep.subr.mxu0 0.0
  %733 = vmatpush2.msra.mxu0 0.0
  %734 = vmatprep.subr.mxu0 0.0
  %735 = vmatpush2.msra.mxu0 0.0
  %736 = vmatprep.subr.mxu0 0.0
  %737 = vmatpush2.msra.mxu0 0.0
  %738 = vmatprep.subr.mxu0 0.0
  %739 = vmatpush2.msra.mxu0 0.0
  %740 = vmatprep.subr.mxu0 0.0
  %741 = vmatpush2.msra.mxu0 0.0
  %742 = vmatprep.subr.mxu0 0.0
  %743 = vmatpush2.msra.mxu0 0.0
  %744 = vmatprep.subr.mxu0 0.0
  %745 = vmatpush2.msra.mxu0 0.0
  %746 = vmatprep.subr.mxu0 0.0
  %747 = vmatpush2.msra.mxu0 0.0
  %748 = vmatprep.subr.mxu0 0.0
  %749 = vmatpush2.msra.mxu0 0.0
  %750 = vmatprep.subr.mxu0 0.0
  %751 = vmatpush2.msra.mxu0 0.0
  %752 = vmatprep.subr.mxu0 0.0
  %753 = vmatpush2.msra.mxu0 0.0
  %754 = vmatprep.subr.mxu0 0.0
  %755 = vmatpush2.msra.mxu0 0.0
  %756 = vmatprep.subr.mxu0 0.0
  %757 = vmatpush2.msra.mxu0 0.0
  %758 = vmatprep.subr.mxu0 0.0
  %759 = vmatpush2.msra.mxu0 0.0
  %760 = vmatprep.subr.mxu0 0.0
  %761 = vmatpush2.msra.mxu0 0.0
  %762 = vmatprep.subr.mxu0 0.0
  %763 = vmatpush2.msra.mxu0 0.0
  %764 = vmatprep.mubr.f32.mxu0 0.0
  %765 = vmatmul.mubr.f32.gmra.mxu0 %v695
  %v766 = vpop.f32.mrf.mxu0
  %v767 = vadd.f32 0.0, %v766
  %v768 = vpop.f32.mrf.mxu0
  %v769 = vadd.f32 0.0, %v768
  %770 = vmatprep.mubr.f32.mxu0 0.0
  %771 = vmatmul.mubr.f32.gmra.mxu0 %v698
  %v772 = vpop.f32.mrf.mxu0
  %v773 = vadd.f32 0.0, %v772
  %v774 = vpop.f32.mrf.mxu0
  %v775 = vadd.f32 0.0, %v774
  %776 = vdwg.mxu0
  %s777 = scalar_lea.vmem %s3, 240
  %v778 = vld [vmem:[%s777] sm:$0xff]
  %v779 = vld [vmem:[%s777 + $0x8] sm:$0xff]
  %v780 = vld [vmem:[%s777 + $0x10] sm:$0xff]
  %v781 = vld [vmem:[%s777 + $0x18] sm:$0xff]
  %v782 = vld [vmem:[%s777 + $0x20] sm:$0xff]
  %v783 = vld [vmem:[%s777 + $0x28] sm:$0xff]
  %v784 = vld [vmem:[%s777 + $0x30] sm:$0xff]
  %v785 = vld [vmem:[%s777 + $0x38] sm:$0xff]
  %v786 = vld [vmem:[%s777 + $0x40] sm:$0xff]
  %v787 = vld [vmem:[%s777 + $0x48] sm:$0xff]
  %v788 = vld [vmem:[%s777 + $0x50] sm:$0xff]
  %v789 = vld [vmem:[%s777 + $0x58] sm:$0xff]
  %v790 = vld [vmem:[%s777 + $0x60] sm:$0xff]
  %v791 = vld [vmem:[%s777 + $0x68] sm:$0xff]
  %v792 = vld [vmem:[%s777 + $0x70] sm:$0xff]
  %v793 = vld [vmem:[%s777 + $0x78] sm:$0xff]
  %v794 = vld [vmem:[%s777 + $0x80] sm:$0xff]
  %v795 = vld [vmem:[%s777 + $0x88] sm:$0xff]
  %v796 = vld [vmem:[%s777 + $0x90] sm:$0xff]
  %v797 = vld [vmem:[%s777 + $0x98] sm:$0xff]
  %v798 = vld [vmem:[%s777 + $0xa0] sm:$0xff]
  %v799 = vld [vmem:[%s777 + $0xa8] sm:$0xff]
  %v800 = vld [vmem:[%s777 + $0xb0] sm:$0xff]
  %v801 = vld [vmem:[%s777 + $0xb8] sm:$0xff]
  %v802 = vld [vmem:[%s777 + $0xc0] sm:$0xff]
  %v803 = vld [vmem:[%s777 + $0xc8] sm:$0xff]
  %v804 = vld [vmem:[%s777 + $0xd0] sm:$0xff]
  %v805 = vld [vmem:[%s777 + $0xd8] sm:$0xff]
  %v806 = vld [vmem:[%s777 + $0xe0] sm:$0xff]
  %v807 = vld [vmem:[%s777 + $0xe8] sm:$0xff]
  %vm808 = vcmask 916480
  %v810 = vsel %vm808, %v769, 0
  %v813 = vsel %vm808, %v775, 0
  %815 = vmatprep.subr.mxu0 0.0
  %816 = vmatpush1.msra.mxu0 %v793
  %817 = vmatprep.subr.mxu0 0.0
  %818 = vmatpush1.msra.mxu0 %v792
  %819 = vmatprep.subr.mxu0 0.0
  %820 = vmatpush1.msra.mxu0 %v791
  %821 = vmatprep.subr.mxu0 0.0
  %822 = vmatpush1.msra.mxu0 %v790
  %823 = vmatprep.subr.mxu0 0.0
  %824 = vmatpush1.msra.mxu0 %v789
  %825 = vmatprep.subr.mxu0 0.0
  %826 = vmatpush1.msra.mxu0 %v788
  %827 = vmatprep.subr.mxu0 0.0
  %828 = vmatpush1.msra.mxu0 %v787
  %829 = vmatprep.subr.mxu0 0.0
  %830 = vmatpush1.msra.mxu0 %v786
  %831 = vmatprep.subr.mxu0 0.0
  %832 = vmatpush1.msra.mxu0 %v785
  %833 = vmatprep.subr.mxu0 0.0
  %834 = vmatpush1.msra.mxu0 %v784
  %835 = vmatprep.subr.mxu0 0.0
  %836 = vmatpush1.msra.mxu0 %v783
  %837 = vmatprep.subr.mxu0 0.0
  %838 = vmatpush1.msra.mxu0 %v782
  %839 = vmatprep.subr.mxu0 0.0
  %840 = vmatpush1.msra.mxu0 %v781
  %841 = vmatprep.subr.mxu0 0.0
  %842 = vmatpush1.msra.mxu0 %v780
  %843 = vmatprep.subr.mxu0 0.0
  %844 = vmatpush1.msra.mxu0 %v779
  %845 = vmatprep.subr.mxu0 0.0
  %846 = vmatpush1.msra.mxu0 %v778
  %847 = vmatprep.subr.mxu0 0.0
  %848 = vmatpush2.msra.mxu0 0.0
  %849 = vmatprep.subr.mxu0 0.0
  %850 = vmatpush2.msra.mxu0 0.0
  %851 = vmatprep.subr.mxu0 0.0
  %852 = vmatpush2.msra.mxu0 %v807
  %853 = vmatprep.subr.mxu0 0.0
  %854 = vmatpush2.msra.mxu0 %v806
  %855 = vmatprep.subr.mxu0 0.0
  %856 = vmatpush2.msra.mxu0 %v805
  %857 = vmatprep.subr.mxu0 0.0
  %858 = vmatpush2.msra.mxu0 %v804
  %859 = vmatprep.subr.mxu0 0.0
  %860 = vmatpush2.msra.mxu0 %v803
  %861 = vmatprep.subr.mxu0 0.0
  %862 = vmatpush2.msra.mxu0 %v802
  %863 = vmatprep.subr.mxu0 0.0
  %864 = vmatpush2.msra.mxu0 %v801
  %865 = vmatprep.subr.mxu0 0.0
  %866 = vmatpush2.msra.mxu0 %v800
  %867 = vmatprep.subr.mxu0 0.0
  %868 = vmatpush2.msra.mxu0 %v799
  %869 = vmatprep.subr.mxu0 0.0
  %870 = vmatpush2.msra.mxu0 %v798
  %871 = vmatprep.subr.mxu0 0.0
  %872 = vmatpush2.msra.mxu0 %v797
  %873 = vmatprep.subr.mxu0 0.0
  %874 = vmatpush2.msra.mxu0 %v796
  %875 = vmatprep.subr.mxu0 0.0
  %876 = vmatpush2.msra.mxu0 %v795
  %877 = vmatprep.subr.mxu0 0.0
  %878 = vmatpush2.msra.mxu0 %v794
  %879 = vmatprep.mubr.f32.mxu0 %v810
  %880 = vmatmul.mubr.f32.gmra.mxu0 %v767
  %v881 = vpop.f32.mrf.mxu0
  %v882 = vadd.f32 0.0, %v881
  %v883 = vpop.f32.mrf.mxu0
  %884 = vmatprep.mubr.f32.mxu0 %v813
  %885 = vmatmul.mubr.f32.gmra.mxu0 %v773
  %v886 = vpop.f32.mrf.mxu0
  %v887 = vadd.f32 0.0, %v886
  %v888 = vpop.f32.mrf.mxu0
  %889 = vdwg.mxu0
  %v891 = vsel %vm808, %v648, 0
  %v894 = vsel %vm808, %v654, 0
  %896 = vmatprep.subr.mxu0 0.0
  %897 = vmatpush1.msra.mxu0 %v671
  %898 = vmatprep.subr.mxu0 0.0
  %899 = vmatpush1.msra.mxu0 %v670
  %900 = vmatprep.subr.mxu0 0.0
  %901 = vmatpush1.msra.mxu0 %v669
  %902 = vmatprep.subr.mxu0 0.0
  %903 = vmatpush1.msra.mxu0 %v668
  %904 = vmatprep.subr.mxu0 0.0
  %905 = vmatpush1.msra.mxu0 %v667
  %906 = vmatprep.subr.mxu0 0.0
  %907 = vmatpush1.msra.mxu0 %v666
  %908 = vmatprep.subr.mxu0 0.0
  %909 = vmatpush1.msra.mxu0 %v665
  %910 = vmatprep.subr.mxu0 0.0
  %911 = vmatpush1.msra.mxu0 %v664
  %912 = vmatprep.subr.mxu0 0.0
  %913 = vmatpush1.msra.mxu0 %v663
  %914 = vmatprep.subr.mxu0 0.0
  %915 = vmatpush1.msra.mxu0 %v662
  %916 = vmatprep.subr.mxu0 0.0
  %917 = vmatpush1.msra.mxu0 %v661
  %918 = vmatprep.subr.mxu0 0.0
  %919 = vmatpush1.msra.mxu0 %v660
  %920 = vmatprep.subr.mxu0 0.0
  %921 = vmatpush1.msra.mxu0 %v659
  %922 = vmatprep.subr.mxu0 0.0
  %923 = vmatpush1.msra.mxu0 %v658
  %924 = vmatprep.subr.mxu0 0.0
  %925 = vmatpush1.msra.mxu0 %v657
  %926 = vmatprep.subr.mxu0 0.0
  %927 = vmatpush1.msra.mxu0 %v656
  %928 = vmatprep.subr.mxu0 0.0
  %929 = vmatpush2.msra.mxu0 0.0
  %930 = vmatprep.subr.mxu0 0.0
  %931 = vmatpush2.msra.mxu0 0.0
  %932 = vmatprep.subr.mxu0 0.0
  %933 = vmatpush2.msra.mxu0 %v685
  %934 = vmatprep.subr.mxu0 0.0
  %935 = vmatpush2.msra.mxu0 %v684
  %936 = vmatprep.subr.mxu0 0.0
  %937 = vmatpush2.msra.mxu0 %v683
  %938 = vmatprep.subr.mxu0 0.0
  %939 = vmatpush2.msra.mxu0 %v682
  %940 = vmatprep.subr.mxu0 0.0
  %941 = vmatpush2.msra.mxu0 %v681
  %942 = vmatprep.subr.mxu0 0.0
  %943 = vmatpush2.msra.mxu0 %v680
  %944 = vmatprep.subr.mxu0 0.0
  %945 = vmatpush2.msra.mxu0 %v679
  %946 = vmatprep.subr.mxu0 0.0
  %947 = vmatpush2.msra.mxu0 %v678
  %948 = vmatprep.subr.mxu0 0.0
  %949 = vmatpush2.msra.mxu0 %v677
  %950 = vmatprep.subr.mxu0 0.0
  %951 = vmatpush2.msra.mxu0 %v676
  %952 = vmatprep.subr.mxu0 0.0
  %953 = vmatpush2.msra.mxu0 %v675
  %954 = vmatprep.subr.mxu0 0.0
  %955 = vmatpush2.msra.mxu0 %v674
  %956 = vmatprep.subr.mxu0 0.0
  %957 = vmatpush2.msra.mxu0 %v673
  %958 = vmatprep.subr.mxu0 0.0
  %959 = vmatpush2.msra.mxu0 %v672
  %960 = vmatprep.mubr.f32.mxu0 %v891
  %961 = vmatmul.mubr.f32.gmra.mxu0 %v646
  %v962 = vpop.f32.mrf.mxu0
  %v963 = vadd.f32 %v882, %v962
  %v964 = vpop.f32.mrf.mxu0
  %965 = vmatprep.mubr.f32.mxu0 %v894
  %966 = vmatmul.mubr.f32.gmra.mxu0 %v652
  %v967 = vpop.f32.mrf.mxu0
  %v968 = vadd.f32 %v887, %v967
  %v969 = vpop.f32.mrf.mxu0
  %970 = vdwg.mxu0
  %v971 = vadd.f32 %v553, 2.0
  %v972 = vadd.f32 %v554, 2.0
  %vm973 = vcmp.eq.f32.partialorder %v552, %v971
  %vm974 = vcmp.eq.f32.partialorder %v552, %v972
  %vm975 = vmand %vm559, %vm973
  %vm976 = vmand %vm560, %vm974
  %v977 = vsel %vm975, 1.0, 0.0
  %v978 = vsel %vm976, 1.0, 0.0
  %v980 = vsel %vm565, %v977, 0
  %v983 = vsel %vm565, %v978, 0
  %985 = vmatprep.subr.mxu0 0.0
  %986 = vmatpush1.msra.mxu0 0.0
  %987 = vmatprep.subr.mxu0 0.0
  %988 = vmatpush1.msra.mxu0 0.0
  %989 = vmatprep.subr.mxu0 0.0
  %990 = vmatpush1.msra.mxu0 0.0
  %991 = vmatprep.subr.mxu0 0.0
  %992 = vmatpush1.msra.mxu0 0.0
  %993 = vmatprep.subr.mxu0 0.0
  %994 = vmatpush1.msra.mxu0 0.0
  %995 = vmatprep.subr.mxu0 0.0
  %996 = vmatpush1.msra.mxu0 0.0
  %997 = vmatprep.subr.mxu0 0.0
  %998 = vmatpush1.msra.mxu0 0.0
  %999 = vmatprep.subr.mxu0 0.0
  %1000 = vmatpush1.msra.mxu0 0.0
  %1001 = vmatprep.subr.mxu0 0.0
  %1002 = vmatpush1.msra.mxu0 0.0
  %1003 = vmatprep.subr.mxu0 0.0
  %1004 = vmatpush1.msra.mxu0 0.0
  %1005 = vmatprep.subr.mxu0 0.0
  %1006 = vmatpush1.msra.mxu0 0.0
  %1007 = vmatprep.subr.mxu0 0.0
  %1008 = vmatpush1.msra.mxu0 0.0
  %1009 = vmatprep.subr.mxu0 %v577
  %1010 = vmatpush1.msra.mxu0 %v574
  %1011 = vmatprep.subr.mxu0 %v538
  %1012 = vmatpush1.msra.mxu0 %v537
  %1013 = vmatprep.subr.mxu0 %v536
  %1014 = vmatpush1.msra.mxu0 %v535
  %1015 = vmatprep.subr.mxu0 %v534
  %1016 = vmatpush1.msra.mxu0 %v533
  %1017 = vmatprep.subr.mxu0 0.0
  %1018 = vmatpush2.msra.mxu0 0.0
  %1019 = vmatprep.subr.mxu0 0.0
  %1020 = vmatpush2.msra.mxu0 0.0
  %1021 = vmatprep.subr.mxu0 0.0
  %1022 = vmatpush2.msra.mxu0 0.0
  %1023 = vmatprep.subr.mxu0 0.0
  %1024 = vmatpush2.msra.mxu0 0.0
  %1025 = vmatprep.subr.mxu0 0.0
  %1026 = vmatpush2.msra.mxu0 0.0
  %1027 = vmatprep.subr.mxu0 0.0
  %1028 = vmatpush2.msra.mxu0 0.0
  %1029 = vmatprep.subr.mxu0 0.0
  %1030 = vmatpush2.msra.mxu0 0.0
  %1031 = vmatprep.subr.mxu0 0.0
  %1032 = vmatpush2.msra.mxu0 0.0
  %1033 = vmatprep.subr.mxu0 0.0
  %1034 = vmatpush2.msra.mxu0 0.0
  %1035 = vmatprep.subr.mxu0 0.0
  %1036 = vmatpush2.msra.mxu0 0.0
  %1037 = vmatprep.subr.mxu0 0.0
  %1038 = vmatpush2.msra.mxu0 0.0
  %1039 = vmatprep.subr.mxu0 0.0
  %1040 = vmatpush2.msra.mxu0 0.0
  %1041 = vmatprep.subr.mxu0 0.0
  %1042 = vmatpush2.msra.mxu0 0.0
  %1043 = vmatprep.subr.mxu0 0.0
  %1044 = vmatpush2.msra.mxu0 0.0
  %1045 = vmatprep.subr.mxu0 0.0
  %1046 = vmatpush2.msra.mxu0 0.0
  %1047 = vmatprep.subr.mxu0 0.0
  %1048 = vmatpush2.msra.mxu0 0.0
  %1049 = vmatprep.mubr.f32.mxu0 0.0
  %1050 = vmatmul.mubr.f32.gmra.mxu0 %v980
  %v1051 = vpop.f32.mrf.mxu0
  %v1052 = vadd.f32 0.0, %v1051
  %v1053 = vpop.f32.mrf.mxu0
  %v1054 = vadd.f32 0.0, %v1053
  %1055 = vmatprep.mubr.f32.mxu0 0.0
  %1056 = vmatmul.mubr.f32.gmra.mxu0 %v983
  %v1057 = vpop.f32.mrf.mxu0
  %v1058 = vadd.f32 0.0, %v1057
  %v1059 = vpop.f32.mrf.mxu0
  %v1060 = vadd.f32 0.0, %v1059
  %1061 = vdwg.mxu0
  %s1062 = scalar_lea.vmem %s3, 480
  %v1063 = vld [vmem:[%s1062] sm:$0xff]
  %v1064 = vld [vmem:[%s1062 + $0x8] sm:$0xff]
  %v1065 = vld [vmem:[%s1062 + $0x10] sm:$0xff]
  %v1066 = vld [vmem:[%s1062 + $0x18] sm:$0xff]
  %v1067 = vld [vmem:[%s1062 + $0x20] sm:$0xff]
  %v1068 = vld [vmem:[%s1062 + $0x28] sm:$0xff]
  %v1069 = vld [vmem:[%s1062 + $0x30] sm:$0xff]
  %v1070 = vld [vmem:[%s1062 + $0x38] sm:$0xff]
  %v1071 = vld [vmem:[%s1062 + $0x40] sm:$0xff]
  %v1072 = vld [vmem:[%s1062 + $0x48] sm:$0xff]
  %v1073 = vld [vmem:[%s1062 + $0x50] sm:$0xff]
  %v1074 = vld [vmem:[%s1062 + $0x58] sm:$0xff]
  %v1075 = vld [vmem:[%s1062 + $0x60] sm:$0xff]
  %v1076 = vld [vmem:[%s1062 + $0x68] sm:$0xff]
  %v1077 = vld [vmem:[%s1062 + $0x70] sm:$0xff]
  %v1078 = vld [vmem:[%s1062 + $0x78] sm:$0xff]
  %v1079 = vld [vmem:[%s1062 + $0x80] sm:$0xff]
  %v1080 = vld [vmem:[%s1062 + $0x88] sm:$0xff]
  %v1081 = vld [vmem:[%s1062 + $0x90] sm:$0xff]
  %v1082 = vld [vmem:[%s1062 + $0x98] sm:$0xff]
  %v1083 = vld [vmem:[%s1062 + $0xa0] sm:$0xff]
  %v1084 = vld [vmem:[%s1062 + $0xa8] sm:$0xff]
  %v1085 = vld [vmem:[%s1062 + $0xb0] sm:$0xff]
  %v1086 = vld [vmem:[%s1062 + $0xb8] sm:$0xff]
  %v1087 = vld [vmem:[%s1062 + $0xc0] sm:$0xff]
  %v1088 = vld [vmem:[%s1062 + $0xc8] sm:$0xff]
  %v1089 = vld [vmem:[%s1062 + $0xd0] sm:$0xff]
  %v1090 = vld [vmem:[%s1062 + $0xd8] sm:$0xff]
  %v1091 = vld [vmem:[%s1062 + $0xe0] sm:$0xff]
  %v1092 = vld [vmem:[%s1062 + $0xe8] sm:$0xff]
  %v1094 = vsel %vm808, %v1054, 0
  %v1097 = vsel %vm808, %v1060, 0
  %1099 = vmatprep.subr.mxu0 0.0
  %1100 = vmatpush1.msra.mxu0 %v1078
  %1101 = vmatprep.subr.mxu0 0.0
  %1102 = vmatpush1.msra.mxu0 %v1077
  %1103 = vmatprep.subr.mxu0 0.0
  %1104 = vmatpush1.msra.mxu0 %v1076
  %1105 = vmatprep.subr.mxu0 0.0
  %1106 = vmatpush1.msra.mxu0 %v1075
  %1107 = vmatprep.subr.mxu0 0.0
  %1108 = vmatpush1.msra.mxu0 %v1074
  %1109 = vmatprep.subr.mxu0 0.0
  %1110 = vmatpush1.msra.mxu0 %v1073
  %1111 = vmatprep.subr.mxu0 0.0
  %1112 = vmatpush1.msra.mxu0 %v1072
  %1113 = vmatprep.subr.mxu0 0.0
  %1114 = vmatpush1.msra.mxu0 %v1071
  %1115 = vmatprep.subr.mxu0 0.0
  %1116 = vmatpush1.msra.mxu0 %v1070
  %1117 = vmatprep.subr.mxu0 0.0
  %1118 = vmatpush1.msra.mxu0 %v1069
  %1119 = vmatprep.subr.mxu0 0.0
  %1120 = vmatpush1.msra.mxu0 %v1068
  %1121 = vmatprep.subr.mxu0 0.0
  %1122 = vmatpush1.msra.mxu0 %v1067
  %1123 = vmatprep.subr.mxu0 0.0
  %1124 = vmatpush1.msra.mxu0 %v1066
  %1125 = vmatprep.subr.mxu0 0.0
  %1126 = vmatpush1.msra.mxu0 %v1065
  %1127 = vmatprep.subr.mxu0 0.0
  %1128 = vmatpush1.msra.mxu0 %v1064
  %1129 = vmatprep.subr.mxu0 0.0
  %1130 = vmatpush1.msra.mxu0 %v1063
  %1131 = vmatprep.subr.mxu0 0.0
  %1132 = vmatpush2.msra.mxu0 0.0
  %1133 = vmatprep.subr.mxu0 0.0
  %1134 = vmatpush2.msra.mxu0 0.0
  %1135 = vmatprep.subr.mxu0 0.0
  %1136 = vmatpush2.msra.mxu0 %v1092
  %1137 = vmatprep.subr.mxu0 0.0
  %1138 = vmatpush2.msra.mxu0 %v1091
  %1139 = vmatprep.subr.mxu0 0.0
  %1140 = vmatpush2.msra.mxu0 %v1090
  %1141 = vmatprep.subr.mxu0 0.0
  %1142 = vmatpush2.msra.mxu0 %v1089
  %1143 = vmatprep.subr.mxu0 0.0
  %1144 = vmatpush2.msra.mxu0 %v1088
  %1145 = vmatprep.subr.mxu0 0.0
  %1146 = vmatpush2.msra.mxu0 %v1087
  %1147 = vmatprep.subr.mxu0 0.0
  %1148 = vmatpush2.msra.mxu0 %v1086
  %1149 = vmatprep.subr.mxu0 0.0
  %1150 = vmatpush2.msra.mxu0 %v1085
  %1151 = vmatprep.subr.mxu0 0.0
  %1152 = vmatpush2.msra.mxu0 %v1084
  %1153 = vmatprep.subr.mxu0 0.0
  %1154 = vmatpush2.msra.mxu0 %v1083
  %1155 = vmatprep.subr.mxu0 0.0
  %1156 = vmatpush2.msra.mxu0 %v1082
  %1157 = vmatprep.subr.mxu0 0.0
  %1158 = vmatpush2.msra.mxu0 %v1081
  %1159 = vmatprep.subr.mxu0 0.0
  %1160 = vmatpush2.msra.mxu0 %v1080
  %1161 = vmatprep.subr.mxu0 0.0
  %1162 = vmatpush2.msra.mxu0 %v1079
  %1163 = vmatprep.mubr.f32.mxu0 %v1094
  %1164 = vmatmul.mubr.f32.gmra.mxu0 %v1052
  %v1165 = vpop.f32.mrf.mxu0
  %v1166 = vadd.f32 0.0, %v1165
  %v1167 = vpop.f32.mrf.mxu0
  %1168 = vmatprep.mubr.f32.mxu0 %v1097
  %1169 = vmatmul.mubr.f32.gmra.mxu0 %v1058
  %v1170 = vpop.f32.mrf.mxu0
  %v1171 = vadd.f32 0.0, %v1170
  %v1172 = vpop.f32.mrf.mxu0
  %1173 = vdwg.mxu0
  %v1174 = vadd.f32 %v963, %v1166
  %v1175 = vadd.f32 %v968, %v1171
  %v1176 = vld [vmem:[%s4] sm:$0x1]
  %v1178 = vlaneseq
  %v1179 = vshrl.u32 %v1178, 7
  %v1180 = vsub.s32 0, %v1179
  %v1181 = vrot.slane %v1176, %v1180
  %v1183 = vadd.f32 %v1174, %v1181
  %v1184 = vadd.f32 %v1175, %v1181
  %v1185 = vmul.f32 %v35, 0.33333334
  %v1186 = vfloor.f32 %v1185
  %v1187 = vmul.f32 %v41, 0.14285715
  %v1188 = vfloor.f32 %v1187
  %v1189 = vmul.f32 %v1186, 3.0
  %v1190 = vsub.f32 %v35, %v1189
  %v1191 = vmul.f32 %v1188, 7.0
  %v1192 = vsub.f32 %v41, %v1191
  %v1193 = vmul.f32 %v1190, 2.0
  %v1194 = vadd.f32 %v1193, 0.0
  %vm1195 = vcmp.eq.f32.partialorder %v1192, %v1194
  %vm1196 = vcmp.eq.f32.partialorder %v1186, %v1188
  %vm1197 = vmand %vm1196, %vm1195
  %v1198 = vsel %vm1197, 1.0, 0.0
  %vm1199 = vcmask 113664
  %v1201 = vsel %vm1199, %v1198, 0
  %v1204 = vsel %vm572, %v1184, 0
  %1206 = vmatprep.subr.mxu0 0.0
  %1207 = vmatpush1.msra.mxu0 0.0
  %1208 = vmatprep.subr.mxu0 0.0
  %1209 = vmatpush1.msra.mxu0 0.0
  %1210 = vmatprep.subr.mxu0 0.0
  %1211 = vmatpush1.msra.mxu0 0.0
  %1212 = vmatprep.subr.mxu0 0.0
  %1213 = vmatpush1.msra.mxu0 0.0
  %1214 = vmatprep.subr.mxu0 0.0
  %1215 = vmatpush1.msra.mxu0 0.0
  %1216 = vmatprep.subr.mxu0 0.0
  %1217 = vmatpush1.msra.mxu0 0.0
  %1218 = vmatprep.subr.mxu0 0.0
  %1219 = vmatpush1.msra.mxu0 0.0
  %1220 = vmatprep.subr.mxu0 0.0
  %1221 = vmatpush1.msra.mxu0 0.0
  %1222 = vmatprep.subr.mxu0 0.0
  %1223 = vmatpush1.msra.mxu0 0.0
  %1224 = vmatprep.subr.mxu0 0.0
  %1225 = vmatpush1.msra.mxu0 0.0
  %1226 = vmatprep.subr.mxu0 0.0
  %1227 = vmatpush1.msra.mxu0 0.0
  %1228 = vmatprep.subr.mxu0 0.0
  %1229 = vmatpush1.msra.mxu0 0.0
  %1230 = vmatprep.subr.mxu0 0.0
  %1231 = vmatpush1.msra.mxu0 0.0
  %1232 = vmatprep.subr.mxu0 0.0
  %1233 = vmatpush1.msra.mxu0 0.0
  %1234 = vmatprep.subr.mxu0 0.0
  %1235 = vmatpush1.msra.mxu0 %v1204
  %1236 = vmatprep.subr.mxu0 0.0
  %1237 = vmatpush1.msra.mxu0 %v1183
  %1238 = vmatprep.subr.mxu0 0.0
  %1239 = vmatpush2.msra.mxu0 0.0
  %1240 = vmatprep.subr.mxu0 0.0
  %1241 = vmatpush2.msra.mxu0 0.0
  %1242 = vmatprep.subr.mxu0 0.0
  %1243 = vmatpush2.msra.mxu0 0.0
  %1244 = vmatprep.subr.mxu0 0.0
  %1245 = vmatpush2.msra.mxu0 0.0
  %1246 = vmatprep.subr.mxu0 0.0
  %1247 = vmatpush2.msra.mxu0 0.0
  %1248 = vmatprep.subr.mxu0 0.0
  %1249 = vmatpush2.msra.mxu0 0.0
  %1250 = vmatprep.subr.mxu0 0.0
  %1251 = vmatpush2.msra.mxu0 0.0
  %1252 = vmatprep.subr.mxu0 0.0
  %1253 = vmatpush2.msra.mxu0 0.0
  %1254 = vmatprep.subr.mxu0 0.0
  %1255 = vmatpush2.msra.mxu0 0.0
  %1256 = vmatprep.subr.mxu0 0.0
  %1257 = vmatpush2.msra.mxu0 0.0
  %1258 = vmatprep.subr.mxu0 0.0
  %1259 = vmatpush2.msra.mxu0 0.0
  %1260 = vmatprep.subr.mxu0 0.0
  %1261 = vmatpush2.msra.mxu0 0.0
  %1262 = vmatprep.subr.mxu0 0.0
  %1263 = vmatpush2.msra.mxu0 0.0
  %1264 = vmatprep.subr.mxu0 0.0
  %1265 = vmatpush2.msra.mxu0 0.0
  %1266 = vmatprep.subr.mxu0 0.0
  %1267 = vmatpush2.msra.mxu0 0.0
  %1268 = vmatprep.subr.mxu0 0.0
  %1269 = vmatpush2.msra.mxu0 0.0
  %1270 = vmatprep.mubr.f32.mxu0 0.0
  %1271 = vmatmul.mubr.f32.gmra.mxu0 %v1201
  %v1272 = vpop.f32.mrf.mxu0
  %v1273 = vadd.f32 0.0, %v1272
  %v1274 = vpop.f32.mrf.mxu0
  %1275 = vdwg.mxu0
  %v1276 = vld [vmem:[%s5] sm:$0xff]
  %v1277 = vld [vmem:[%s5 + $0x8] sm:$0xff]
  %v1278 = vld [vmem:[%s5 + $0x10] sm:$0xff]
  %v1279 = vld [vmem:[%s5 + $0x18] sm:$0xff]
  %v1280 = vld [vmem:[%s5 + $0x20] sm:$0xff]
  %v1281 = vld [vmem:[%s5 + $0x28] sm:$0xff]
  %v1282 = vld [vmem:[%s5 + $0x30] sm:$0xff]
  %v1283 = vld [vmem:[%s5 + $0x38] sm:$0xff]
  %v1284 = vld [vmem:[%s5 + $0x40] sm:$0xff]
  %v1285 = vld [vmem:[%s5 + $0x48] sm:$0xff]
  %v1286 = vld [vmem:[%s5 + $0x50] sm:$0xff]
  %v1287 = vld [vmem:[%s5 + $0x58] sm:$0xff]
  %v1288 = vld [vmem:[%s5 + $0x60] sm:$0xff]
  %v1289 = vld [vmem:[%s5 + $0x68] sm:$0xff]
  %v1290 = vadd.f32 %v1193, 1.0
  %vm1291 = vcmp.eq.f32.partialorder %v1192, %v1290
  %vm1292 = vmand %vm1196, %vm1291
  %v1293 = vsel %vm1292, 1.0, 0.0
  %v1295 = vsel %vm1199, %v1293, 0
  %1297 = vmatprep.subr.mxu0 0.0
  %1298 = vmatpush1.msra.mxu0 0.0
  %1299 = vmatprep.subr.mxu0 0.0
  %1300 = vmatpush1.msra.mxu0 0.0
  %1301 = vmatprep.subr.mxu0 0.0
  %1302 = vmatpush1.msra.mxu0 0.0
  %1303 = vmatprep.subr.mxu0 0.0
  %1304 = vmatpush1.msra.mxu0 0.0
  %1305 = vmatprep.subr.mxu0 0.0
  %1306 = vmatpush1.msra.mxu0 0.0
  %1307 = vmatprep.subr.mxu0 0.0
  %1308 = vmatpush1.msra.mxu0 0.0
  %1309 = vmatprep.subr.mxu0 0.0
  %1310 = vmatpush1.msra.mxu0 0.0
  %1311 = vmatprep.subr.mxu0 0.0
  %1312 = vmatpush1.msra.mxu0 0.0
  %1313 = vmatprep.subr.mxu0 0.0
  %1314 = vmatpush1.msra.mxu0 0.0
  %1315 = vmatprep.subr.mxu0 0.0
  %1316 = vmatpush1.msra.mxu0 0.0
  %1317 = vmatprep.subr.mxu0 0.0
  %1318 = vmatpush1.msra.mxu0 0.0
  %1319 = vmatprep.subr.mxu0 0.0
  %1320 = vmatpush1.msra.mxu0 0.0
  %1321 = vmatprep.subr.mxu0 0.0
  %1322 = vmatpush1.msra.mxu0 0.0
  %1323 = vmatprep.subr.mxu0 0.0
  %1324 = vmatpush1.msra.mxu0 0.0
  %1325 = vmatprep.subr.mxu0 0.0
  %1326 = vmatpush1.msra.mxu0 %v1204
  %1327 = vmatprep.subr.mxu0 0.0
  %1328 = vmatpush1.msra.mxu0 %v1183
  %1329 = vmatprep.subr.mxu0 0.0
  %1330 = vmatpush2.msra.mxu0 0.0
  %1331 = vmatprep.subr.mxu0 0.0
  %1332 = vmatpush2.msra.mxu0 0.0
  %1333 = vmatprep.subr.mxu0 0.0
  %1334 = vmatpush2.msra.mxu0 0.0
  %1335 = vmatprep.subr.mxu0 0.0
  %1336 = vmatpush2.msra.mxu0 0.0
  %1337 = vmatprep.subr.mxu0 0.0
  %1338 = vmatpush2.msra.mxu0 0.0
  %1339 = vmatprep.subr.mxu0 0.0
  %1340 = vmatpush2.msra.mxu0 0.0
  %1341 = vmatprep.subr.mxu0 0.0
  %1342 = vmatpush2.msra.mxu0 0.0
  %1343 = vmatprep.subr.mxu0 0.0
  %1344 = vmatpush2.msra.mxu0 0.0
  %1345 = vmatprep.subr.mxu0 0.0
  %1346 = vmatpush2.msra.mxu0 0.0
  %1347 = vmatprep.subr.mxu0 0.0
  %1348 = vmatpush2.msra.mxu0 0.0
  %1349 = vmatprep.subr.mxu0 0.0
  %1350 = vmatpush2.msra.mxu0 0.0
  %1351 = vmatprep.subr.mxu0 0.0
  %1352 = vmatpush2.msra.mxu0 0.0
  %1353 = vmatprep.subr.mxu0 0.0
  %1354 = vmatpush2.msra.mxu0 0.0
  %1355 = vmatprep.subr.mxu0 0.0
  %1356 = vmatpush2.msra.mxu0 0.0
  %1357 = vmatprep.subr.mxu0 0.0
  %1358 = vmatpush2.msra.mxu0 0.0
  %1359 = vmatprep.subr.mxu0 0.0
  %1360 = vmatpush2.msra.mxu0 0.0
  %1361 = vmatprep.mubr.f32.mxu0 0.0
  %1362 = vmatmul.mubr.f32.gmra.mxu0 %v1295
  %v1363 = vpop.f32.mrf.mxu0
  %v1364 = vadd.f32 0.0, %v1363
  %v1365 = vpop.f32.mrf.mxu0
  %1366 = vdwg.mxu0
  %s1367 = scalar_lea.vmem %s5, 112
  %v1368 = vld [vmem:[%s1367] sm:$0xff]
  %v1369 = vld [vmem:[%s1367 + $0x8] sm:$0xff]
  %v1370 = vld [vmem:[%s1367 + $0x10] sm:$0xff]
  %v1371 = vld [vmem:[%s1367 + $0x18] sm:$0xff]
  %v1372 = vld [vmem:[%s1367 + $0x20] sm:$0xff]
  %v1373 = vld [vmem:[%s1367 + $0x28] sm:$0xff]
  %v1374 = vld [vmem:[%s1367 + $0x30] sm:$0xff]
  %v1375 = vld [vmem:[%s1367 + $0x38] sm:$0xff]
  %v1376 = vld [vmem:[%s1367 + $0x40] sm:$0xff]
  %v1377 = vld [vmem:[%s1367 + $0x48] sm:$0xff]
  %v1378 = vld [vmem:[%s1367 + $0x50] sm:$0xff]
  %v1379 = vld [vmem:[%s1367 + $0x58] sm:$0xff]
  %v1380 = vld [vmem:[%s1367 + $0x60] sm:$0xff]
  %v1381 = vld [vmem:[%s1367 + $0x68] sm:$0xff]
  %v1383 = vsel %vm808, %v1364, 0
  %1385 = vmatprep.subr.mxu0 0.0
  %1386 = vmatpush1.msra.mxu0 0.0
  %1387 = vmatprep.subr.mxu0 0.0
  %1388 = vmatpush1.msra.mxu0 0.0
  %1389 = vmatprep.subr.mxu0 0.0
  %1390 = vmatpush1.msra.mxu0 %v1381
  %1391 = vmatprep.subr.mxu0 0.0
  %1392 = vmatpush1.msra.mxu0 %v1380
  %1393 = vmatprep.subr.mxu0 0.0
  %1394 = vmatpush1.msra.mxu0 %v1379
  %1395 = vmatprep.subr.mxu0 0.0
  %1396 = vmatpush1.msra.mxu0 %v1378
  %1397 = vmatprep.subr.mxu0 0.0
  %1398 = vmatpush1.msra.mxu0 %v1377
  %1399 = vmatprep.subr.mxu0 0.0
  %1400 = vmatpush1.msra.mxu0 %v1376
  %1401 = vmatprep.subr.mxu0 0.0
  %1402 = vmatpush1.msra.mxu0 %v1375
  %1403 = vmatprep.subr.mxu0 0.0
  %1404 = vmatpush1.msra.mxu0 %v1374
  %1405 = vmatprep.subr.mxu0 0.0
  %1406 = vmatpush1.msra.mxu0 %v1373
  %1407 = vmatprep.subr.mxu0 0.0
  %1408 = vmatpush1.msra.mxu0 %v1372
  %1409 = vmatprep.subr.mxu0 0.0
  %1410 = vmatpush1.msra.mxu0 %v1371
  %1411 = vmatprep.subr.mxu0 0.0
  %1412 = vmatpush1.msra.mxu0 %v1370
  %1413 = vmatprep.subr.mxu0 0.0
  %1414 = vmatpush1.msra.mxu0 %v1369
  %1415 = vmatprep.subr.mxu0 0.0
  %1416 = vmatpush1.msra.mxu0 %v1368
  %1417 = vmatprep.subr.mxu0 0.0
  %1418 = vmatpush2.msra.mxu0 0.0
  %1419 = vmatprep.subr.mxu0 0.0
  %1420 = vmatpush2.msra.mxu0 0.0
  %1421 = vmatprep.subr.mxu0 0.0
  %1422 = vmatpush2.msra.mxu0 0.0
  %1423 = vmatprep.subr.mxu0 0.0
  %1424 = vmatpush2.msra.mxu0 0.0
  %1425 = vmatprep.subr.mxu0 0.0
  %1426 = vmatpush2.msra.mxu0 0.0
  %1427 = vmatprep.subr.mxu0 0.0
  %1428 = vmatpush2.msra.mxu0 0.0
  %1429 = vmatprep.subr.mxu0 0.0
  %1430 = vmatpush2.msra.mxu0 0.0
  %1431 = vmatprep.subr.mxu0 0.0
  %1432 = vmatpush2.msra.mxu0 0.0
  %1433 = vmatprep.subr.mxu0 0.0
  %1434 = vmatpush2.msra.mxu0 0.0
  %1435 = vmatprep.subr.mxu0 0.0
  %1436 = vmatpush2.msra.mxu0 0.0
  %1437 = vmatprep.subr.mxu0 0.0
  %1438 = vmatpush2.msra.mxu0 0.0
  %1439 = vmatprep.subr.mxu0 0.0
  %1440 = vmatpush2.msra.mxu0 0.0
  %1441 = vmatprep.subr.mxu0 0.0
  %1442 = vmatpush2.msra.mxu0 0.0
  %1443 = vmatprep.subr.mxu0 0.0
  %1444 = vmatpush2.msra.mxu0 0.0
  %1445 = vmatprep.subr.mxu0 0.0
  %1446 = vmatpush2.msra.mxu0 0.0
  %1447 = vmatprep.subr.mxu0 0.0
  %1448 = vmatpush2.msra.mxu0 0.0
  %1449 = vmatprep.mubr.f32.mxu0 0.0
  %1450 = vmatmul.mubr.f32.gmra.mxu0 %v1383
  %v1451 = vpop.f32.mrf.mxu0
  %v1452 = vadd.f32 0.0, %v1451
  %v1453 = vpop.f32.mrf.mxu0
  %1454 = vdwg.mxu0
  %v1456 = vsel %vm808, %v1273, 0
  %1458 = vmatprep.subr.mxu0 0.0
  %1459 = vmatpush1.msra.mxu0 0.0
  %1460 = vmatprep.subr.mxu0 0.0
  %1461 = vmatpush1.msra.mxu0 0.0
  %1462 = vmatprep.subr.mxu0 0.0
  %1463 = vmatpush1.msra.mxu0 %v1289
  %1464 = vmatprep.subr.mxu0 0.0
  %1465 = vmatpush1.msra.mxu0 %v1288
  %1466 = vmatprep.subr.mxu0 0.0
  %1467 = vmatpush1.msra.mxu0 %v1287
  %1468 = vmatprep.subr.mxu0 0.0
  %1469 = vmatpush1.msra.mxu0 %v1286
  %1470 = vmatprep.subr.mxu0 0.0
  %1471 = vmatpush1.msra.mxu0 %v1285
  %1472 = vmatprep.subr.mxu0 0.0
  %1473 = vmatpush1.msra.mxu0 %v1284
  %1474 = vmatprep.subr.mxu0 0.0
  %1475 = vmatpush1.msra.mxu0 %v1283
  %1476 = vmatprep.subr.mxu0 0.0
  %1477 = vmatpush1.msra.mxu0 %v1282
  %1478 = vmatprep.subr.mxu0 0.0
  %1479 = vmatpush1.msra.mxu0 %v1281
  %1480 = vmatprep.subr.mxu0 0.0
  %1481 = vmatpush1.msra.mxu0 %v1280
  %1482 = vmatprep.subr.mxu0 0.0
  %1483 = vmatpush1.msra.mxu0 %v1279
  %1484 = vmatprep.subr.mxu0 0.0
  %1485 = vmatpush1.msra.mxu0 %v1278
  %1486 = vmatprep.subr.mxu0 0.0
  %1487 = vmatpush1.msra.mxu0 %v1277
  %1488 = vmatprep.subr.mxu0 0.0
  %1489 = vmatpush1.msra.mxu0 %v1276
  %1490 = vmatprep.subr.mxu0 0.0
  %1491 = vmatpush2.msra.mxu0 0.0
  %1492 = vmatprep.subr.mxu0 0.0
  %1493 = vmatpush2.msra.mxu0 0.0
  %1494 = vmatprep.subr.mxu0 0.0
  %1495 = vmatpush2.msra.mxu0 0.0
  %1496 = vmatprep.subr.mxu0 0.0
  %1497 = vmatpush2.msra.mxu0 0.0
  %1498 = vmatprep.subr.mxu0 0.0
  %1499 = vmatpush2.msra.mxu0 0.0
  %1500 = vmatprep.subr.mxu0 0.0
  %1501 = vmatpush2.msra.mxu0 0.0
  %1502 = vmatprep.subr.mxu0 0.0
  %1503 = vmatpush2.msra.mxu0 0.0
  %1504 = vmatprep.subr.mxu0 0.0
  %1505 = vmatpush2.msra.mxu0 0.0
  %1506 = vmatprep.subr.mxu0 0.0
  %1507 = vmatpush2.msra.mxu0 0.0
  %1508 = vmatprep.subr.mxu0 0.0
  %1509 = vmatpush2.msra.mxu0 0.0
  %1510 = vmatprep.subr.mxu0 0.0
  %1511 = vmatpush2.msra.mxu0 0.0
  %1512 = vmatprep.subr.mxu0 0.0
  %1513 = vmatpush2.msra.mxu0 0.0
  %1514 = vmatprep.subr.mxu0 0.0
  %1515 = vmatpush2.msra.mxu0 0.0
  %1516 = vmatprep.subr.mxu0 0.0
  %1517 = vmatpush2.msra.mxu0 0.0
  %1518 = vmatprep.subr.mxu0 0.0
  %1519 = vmatpush2.msra.mxu0 0.0
  %1520 = vmatprep.subr.mxu0 0.0
  %1521 = vmatpush2.msra.mxu0 0.0
  %1522 = vmatprep.mubr.f32.mxu0 0.0
  %1523 = vmatmul.mubr.f32.gmra.mxu0 %v1456
  %v1524 = vpop.f32.mrf.mxu0
  %v1525 = vadd.f32 %v1452, %v1524
  %v1526 = vpop.f32.mrf.mxu0
  %1527 = vdwg.mxu0
  %v1528 = vadd.f32 %v1193, 2.0
  %vm1529 = vcmp.eq.f32.partialorder %v1192, %v1528
  %vm1530 = vmand %vm1196, %vm1529
  %v1531 = vsel %vm1530, 1.0, 0.0
  %v1533 = vsel %vm1199, %v1531, 0
  %1535 = vmatprep.subr.mxu0 0.0
  %1536 = vmatpush1.msra.mxu0 0.0
  %1537 = vmatprep.subr.mxu0 0.0
  %1538 = vmatpush1.msra.mxu0 0.0
  %1539 = vmatprep.subr.mxu0 0.0
  %1540 = vmatpush1.msra.mxu0 0.0
  %1541 = vmatprep.subr.mxu0 0.0
  %1542 = vmatpush1.msra.mxu0 0.0
  %1543 = vmatprep.subr.mxu0 0.0
  %1544 = vmatpush1.msra.mxu0 0.0
  %1545 = vmatprep.subr.mxu0 0.0
  %1546 = vmatpush1.msra.mxu0 0.0
  %1547 = vmatprep.subr.mxu0 0.0
  %1548 = vmatpush1.msra.mxu0 0.0
  %1549 = vmatprep.subr.mxu0 0.0
  %1550 = vmatpush1.msra.mxu0 0.0
  %1551 = vmatprep.subr.mxu0 0.0
  %1552 = vmatpush1.msra.mxu0 0.0
  %1553 = vmatprep.subr.mxu0 0.0
  %1554 = vmatpush1.msra.mxu0 0.0
  %1555 = vmatprep.subr.mxu0 0.0
  %1556 = vmatpush1.msra.mxu0 0.0
  %1557 = vmatprep.subr.mxu0 0.0
  %1558 = vmatpush1.msra.mxu0 0.0
  %1559 = vmatprep.subr.mxu0 0.0
  %1560 = vmatpush1.msra.mxu0 0.0
  %1561 = vmatprep.subr.mxu0 0.0
  %1562 = vmatpush1.msra.mxu0 0.0
  %1563 = vmatprep.subr.mxu0 0.0
  %1564 = vmatpush1.msra.mxu0 %v1204
  %1565 = vmatprep.subr.mxu0 0.0
  %1566 = vmatpush1.msra.mxu0 %v1183
  %1567 = vmatprep.subr.mxu0 0.0
  %1568 = vmatpush2.msra.mxu0 0.0
  %1569 = vmatprep.subr.mxu0 0.0
  %1570 = vmatpush2.msra.mxu0 0.0
  %1571 = vmatprep.subr.mxu0 0.0
  %1572 = vmatpush2.msra.mxu0 0.0
  %1573 = vmatprep.subr.mxu0 0.0
  %1574 = vmatpush2.msra.mxu0 0.0
  %1575 = vmatprep.subr.mxu0 0.0
  %1576 = vmatpush2.msra.mxu0 0.0
  %1577 = vmatprep.subr.mxu0 0.0
  %1578 = vmatpush2.msra.mxu0 0.0
  %1579 = vmatprep.subr.mxu0 0.0
  %1580 = vmatpush2.msra.mxu0 0.0
  %1581 = vmatprep.subr.mxu0 0.0
  %1582 = vmatpush2.msra.mxu0 0.0
  %1583 = vmatprep.subr.mxu0 0.0
  %1584 = vmatpush2.msra.mxu0 0.0
  %1585 = vmatprep.subr.mxu0 0.0
  %1586 = vmatpush2.msra.mxu0 0.0
  %1587 = vmatprep.subr.mxu0 0.0
  %1588 = vmatpush2.msra.mxu0 0.0
  %1589 = vmatprep.subr.mxu0 0.0
  %1590 = vmatpush2.msra.mxu0 0.0
  %1591 = vmatprep.subr.mxu0 0.0
  %1592 = vmatpush2.msra.mxu0 0.0
  %1593 = vmatprep.subr.mxu0 0.0
  %1594 = vmatpush2.msra.mxu0 0.0
  %1595 = vmatprep.subr.mxu0 0.0
  %1596 = vmatpush2.msra.mxu0 0.0
  %1597 = vmatprep.subr.mxu0 0.0
  %1598 = vmatpush2.msra.mxu0 0.0
  %1599 = vmatprep.mubr.f32.mxu0 0.0
  %1600 = vmatmul.mubr.f32.gmra.mxu0 %v1533
  %v1601 = vpop.f32.mrf.mxu0
  %v1602 = vadd.f32 0.0, %v1601
  %v1603 = vpop.f32.mrf.mxu0
  %1604 = vdwg.mxu0
  %s1605 = scalar_lea.vmem %s5, 224
  %v1606 = vld [vmem:[%s1605] sm:$0xff]
  %v1607 = vld [vmem:[%s1605 + $0x8] sm:$0xff]
  %v1608 = vld [vmem:[%s1605 + $0x10] sm:$0xff]
  %v1609 = vld [vmem:[%s1605 + $0x18] sm:$0xff]
  %v1610 = vld [vmem:[%s1605 + $0x20] sm:$0xff]
  %v1611 = vld [vmem:[%s1605 + $0x28] sm:$0xff]
  %v1612 = vld [vmem:[%s1605 + $0x30] sm:$0xff]
  %v1613 = vld [vmem:[%s1605 + $0x38] sm:$0xff]
  %v1614 = vld [vmem:[%s1605 + $0x40] sm:$0xff]
  %v1615 = vld [vmem:[%s1605 + $0x48] sm:$0xff]
  %v1616 = vld [vmem:[%s1605 + $0x50] sm:$0xff]
  %v1617 = vld [vmem:[%s1605 + $0x58] sm:$0xff]
  %v1618 = vld [vmem:[%s1605 + $0x60] sm:$0xff]
  %v1619 = vld [vmem:[%s1605 + $0x68] sm:$0xff]
  %v1621 = vsel %vm808, %v1602, 0
  %1623 = vmatprep.subr.mxu0 0.0
  %1624 = vmatpush1.msra.mxu0 0.0
  %1625 = vmatprep.subr.mxu0 0.0
  %1626 = vmatpush1.msra.mxu0 0.0
  %1627 = vmatprep.subr.mxu0 0.0
  %1628 = vmatpush1.msra.mxu0 %v1619
  %1629 = vmatprep.subr.mxu0 0.0
  %1630 = vmatpush1.msra.mxu0 %v1618
  %1631 = vmatprep.subr.mxu0 0.0
  %1632 = vmatpush1.msra.mxu0 %v1617
  %1633 = vmatprep.subr.mxu0 0.0
  %1634 = vmatpush1.msra.mxu0 %v1616
  %1635 = vmatprep.subr.mxu0 0.0
  %1636 = vmatpush1.msra.mxu0 %v1615
  %1637 = vmatprep.subr.mxu0 0.0
  %1638 = vmatpush1.msra.mxu0 %v1614
  %1639 = vmatprep.subr.mxu0 0.0
  %1640 = vmatpush1.msra.mxu0 %v1613
  %1641 = vmatprep.subr.mxu0 0.0
  %1642 = vmatpush1.msra.mxu0 %v1612
  %1643 = vmatprep.subr.mxu0 0.0
  %1644 = vmatpush1.msra.mxu0 %v1611
  %1645 = vmatprep.subr.mxu0 0.0
  %1646 = vmatpush1.msra.mxu0 %v1610
  %1647 = vmatprep.subr.mxu0 0.0
  %1648 = vmatpush1.msra.mxu0 %v1609
  %1649 = vmatprep.subr.mxu0 0.0
  %1650 = vmatpush1.msra.mxu0 %v1608
  %1651 = vmatprep.subr.mxu0 0.0
  %1652 = vmatpush1.msra.mxu0 %v1607
  %1653 = vmatprep.subr.mxu0 0.0
  %1654 = vmatpush1.msra.mxu0 %v1606
  %1655 = vmatprep.subr.mxu0 0.0
  %1656 = vmatpush2.msra.mxu0 0.0
  %1657 = vmatprep.subr.mxu0 0.0
  %1658 = vmatpush2.msra.mxu0 0.0
  %1659 = vmatprep.subr.mxu0 0.0
  %1660 = vmatpush2.msra.mxu0 0.0
  %1661 = vmatprep.subr.mxu0 0.0
  %1662 = vmatpush2.msra.mxu0 0.0
  %1663 = vmatprep.subr.mxu0 0.0
  %1664 = vmatpush2.msra.mxu0 0.0
  %1665 = vmatprep.subr.mxu0 0.0
  %1666 = vmatpush2.msra.mxu0 0.0
  %1667 = vmatprep.subr.mxu0 0.0
  %1668 = vmatpush2.msra.mxu0 0.0
  %1669 = vmatprep.subr.mxu0 0.0
  %1670 = vmatpush2.msra.mxu0 0.0
  %1671 = vmatprep.subr.mxu0 0.0
  %1672 = vmatpush2.msra.mxu0 0.0
  %1673 = vmatprep.subr.mxu0 0.0
  %1674 = vmatpush2.msra.mxu0 0.0
  %1675 = vmatprep.subr.mxu0 0.0
  %1676 = vmatpush2.msra.mxu0 0.0
  %1677 = vmatprep.subr.mxu0 0.0
  %1678 = vmatpush2.msra.mxu0 0.0
  %1679 = vmatprep.subr.mxu0 0.0
  %1680 = vmatpush2.msra.mxu0 0.0
  %1681 = vmatprep.subr.mxu0 0.0
  %1682 = vmatpush2.msra.mxu0 0.0
  %1683 = vmatprep.subr.mxu0 0.0
  %1684 = vmatpush2.msra.mxu0 0.0
  %1685 = vmatprep.subr.mxu0 0.0
  %1686 = vmatpush2.msra.mxu0 0.0
  %1687 = vmatprep.mubr.f32.mxu0 0.0
  %1688 = vmatmul.mubr.f32.gmra.mxu0 %v1621
  %v1689 = vpop.f32.mrf.mxu0
  %v1690 = vadd.f32 0.0, %v1689
  %v1691 = vpop.f32.mrf.mxu0
  %1692 = vdwg.mxu0
  %v1693 = vadd.f32 %v1525, %v1690
  %v1694 = vld [vmem:[%s6] sm:$0x1]
  %v1696 = vlaneseq
  %v1697 = vshrl.u32 %v1696, 7
  %v1698 = vsub.s32 0, %v1697
  %v1699 = vrot.slane %v1694, %v1698
  %v1701 = vadd.f32 %v1693, %v1699
  %vm1702 = vcmask 390144
  %v1703 = vsel %vm1702, %v1701, -inf
  %1704 = vmax.xlane.f32.xlu0 %v1703
  %v1705 = vpop.xlane.xlu0 %1704
  %v1706 = vrot.slane %v1705, 4
  %v1707 = vmax.f32 %v1705, %v1706
  %v1708 = vrot.slane %v1707, 2
  %v1709 = vmax.f32 %v1707, %v1708
  %v1710 = vrot.slane %v1709, 1
  %v1711 = vmax.f32 %v1709, %v1710
  %s1712 = vtos %v1711
  %p1713 = scmp.eq.f32.partialorder %s1712, 0.0
  %s1714 = scalar_select %p1713, 1.0, %s1712
  %v1715 = vstv %s1714
  %v1716 = vrcp.pop %v1715
  %s1717 = vtos %v1716
  %s1718 = smul.f32 256.0, %s1717
  %v1719 = vstv %s1718
  %v1720 = vmul.f32 %v1701, %v1719
  %vm1721 = vcmp.ge.f32.partialorder %v1720, 0.0
  %v1722 = vfloor.f32 %v1720
  %v1723 = vceil.f32 %v1720
  %v1724 = vsel %vm1721, %v1722, %v1723
  %s1725 = smul.f32 %s1714, 0.00390625
  %v1726 = vstv %s1725
  %v1727 = vmul.f32 %v1724, %v1726
  %1728 = vst.msk [vmem:[%s7] sm:$0x3f] %vm1702, %v1727
  // Predicated region
  $region30: #{_encode_nchw.1} parent=0 // pred_check
    _
  $region31: #{_encode_nchw.1} parent=0 // pred_check_branch
    %1730 = sbr.rel (0) target = $region33
  $region32: #{_encode_nchw.1} parent=0 // pred_region
    _
  $region33: #{_encode_nchw.1} parent=0 // pred_fallthru
    _
  // Predicated region
  $region34: #{_encode_nchw.1} parent=0 // pred_check
    _
  $region35: #{_encode_nchw.1} parent=0 // pred_check_branch
    %1732 = sbr.rel (0) target = $region37
  $region36: #{_encode_nchw.1} parent=0 // pred_region
    _
  $region37: #{_encode_nchw.1} parent=0 // pred_fallthru
    _

</llo_original>
